<compile_context>
chip_gen: v7x
topology: tpu7x:2x2x1
jax: 0.10.0
libtpu: 0.0.40
codegen_flags: <defaults>
</compile_context>

<pallas_src>
import math
from functools import partial

import jax
import jax.numpy as jnp
from jax import lax
from jax.experimental import pallas as pl
from jax.experimental.pallas import tpu as pltpu


def _vmem_limit_bytes():
    """Generation-aware scoped-VMEM budget (~3/4 of physical VMEM).

    ~96 MiB on v5e/v6e (128 MiB physical), ~48 MiB on v7x (64 MiB physical);
    falls back to 32 MiB if detection is unavailable."""
    try:
        cap = int(pltpu.get_tpu_info().vmem_capacity_bytes)
        return max(32 * 1024 * 1024, (cap * 3) // 4)
    except Exception:
        return 32 * 1024 * 1024


# ----------------------------------------------------------------------------
# Fused kernel body: QKV projection -> per-head attention -> output projection.
# One grid step per batch element; nothing intermediate touches HBM.
# ----------------------------------------------------------------------------
def _attention_heads(q_full, k_full, v_full, a_ref, *,
                     H, dk, dv, output_attention):
    """Per-head attention on static column slices of the projected slabs.

    Returns the list of per-head (L, dv) outputs; if requested, writes the
    per-head attention map into a_ref[h]."""
    outs = []
    for h in range(H):
        qh = q_full[:, h * dk:(h + 1) * dk]        # (L, dk)  (scale pre-folded)
        kh = k_full[:, h * dk:(h + 1) * dk]        # (S, dk)
        vh = v_full[:, h * dv:(h + 1) * dv]        # (S, dv)
        # Contract dk of both operands -> (L, S); no k.T materialization.
        s = lax.dot_general(qh, kh, (((1,), (1,)), ((), ())),
                            preferred_element_type=jnp.float32)
        m = jnp.max(s, axis=-1, keepdims=True)
        e = jnp.exp(s - m)
        denom = jnp.sum(e, axis=-1, keepdims=True)
        if output_attention:
            # Exact reciprocal: emitted map is checked against the reference
            # at 1e-5 (approx=True would miss that tolerance).
            p = e * pl.reciprocal(denom, approx=False)
            a_ref[h] = p.astype(a_ref.dtype)
            oh = jnp.dot(p, vh, preferred_element_type=jnp.float32)
        else:
            # Normalize AFTER PV: L*dv VPU mults instead of L*S, divide on EUP.
            oh = (jnp.dot(e, vh, preferred_element_type=jnp.float32)
                  * pl.reciprocal(denom, approx=True))
        outs.append(oh)
    return outs


def _fused_body(xq_ref, xk_ref, xv_ref,
                wq_ref, wk_ref, wv_ref, bq_ref, bk_ref, bv_ref,
                wo_ref, bo_ref, y_ref, a_ref, *,
                H, dk, dv, mix, output_attention):
    L = xq_ref.shape[0]

    # 1) lane-dense Q/K/V projections (N = H*dk / H*dv); the weight blocks have
    #    constant index maps, so they are DMA'd once and stay VMEM-resident.
    # TODO(synk): for large models cast MXU operands to bf16 (keep f32 accum);
    # kept f32 here so the 1e-4 / 1e-5 reference checks hold exactly.
    q_full = (jnp.dot(xq_ref[...], wq_ref[...],
                      preferred_element_type=jnp.float32) + bq_ref[...])
    k_full = (jnp.dot(xk_ref[...], wk_ref[...],
                      preferred_element_type=jnp.float32) + bk_ref[...])
    v_full = (jnp.dot(xv_ref[...], wv_ref[...],
                      preferred_element_type=jnp.float32) + bv_ref[...])

    # 2) per-head attention.
    # TODO(synk): for long sequences the S axis should be tiled with an
    # online-softmax accumulator (mandatory on v7x's 64 MiB VMEM); full (L, S)
    # tiles are fine for the shapes exercised here.
    outs = _attention_heads(q_full, k_full, v_full, a_ref,
                            H=H, dk=dk, dv=dv,
                            output_attention=output_attention)

    # 3) concatenate heads and run ONE output projection with K = H*dv.
    if mix:
        # PyTorch: out.transpose(2,1).contiguous().view(B, L, -1)  ==  flat
        # reinterpretation of the head-major (H, L, dv) stack as (L, H*dv).
        slab = jnp.concatenate(outs, axis=0).reshape(L, H * dv)
    else:
        slab = jnp.concatenate(outs, axis=1)                    # (L, H*dv)
    y = (jnp.dot(slab, wo_ref[...], preferred_element_type=jnp.float32)
         + bo_ref[...])
    y_ref[...] = y.astype(y_ref.dtype)


def _fused_kernel_with_map(xq_ref, xk_ref, xv_ref,
                           wq_ref, wk_ref, wv_ref, bq_ref, bk_ref, bv_ref,
                           wo_ref, bo_ref, y_ref, a_ref, **static):
    _fused_body(xq_ref, xk_ref, xv_ref, wq_ref, wk_ref, wv_ref,
                bq_ref, bk_ref, bv_ref, wo_ref, bo_ref, y_ref, a_ref, **static)


def _fused_kernel_no_map(xq_ref, xk_ref, xv_ref,
                         wq_ref, wk_ref, wv_ref, bq_ref, bk_ref, bv_ref,
                         wo_ref, bo_ref, y_ref, **static):
    _fused_body(xq_ref, xk_ref, xv_ref, wq_ref, wk_ref, wv_ref,
                bq_ref, bk_ref, bv_ref, wo_ref, bo_ref, y_ref, None, **static)


# ----------------------------------------------------------------------------
# Parameters & forward
# ----------------------------------------------------------------------------
def init_attention_layer_params(key, d_model, n_heads, d_keys=None, d_values=None):
    d_keys = d_keys or d_model // n_heads
    d_values = d_values or d_model // n_heads
    ks = jax.random.split(key, 8)

    def lin_init(kw, kb, fan_in, fan_out):
        bound = 1.0 / math.sqrt(fan_in)
        w = jax.random.uniform(kw, (fan_in, fan_out), jnp.float32, -bound, bound)
        b = jax.random.uniform(kb, (fan_out,), jnp.float32, -bound, bound)
        return w, b

    wq, bq = lin_init(ks[0], ks[1], d_model, d_keys * n_heads)
    wk, bk = lin_init(ks[2], ks[3], d_model, d_keys * n_heads)
    wv, bv = lin_init(ks[4], ks[5], d_model, d_values * n_heads)
    wo, bo = lin_init(ks[6], ks[7], d_values * n_heads, d_model)

    # One-time weight preprocessing (tiny tensors, outside the hot path):
    # fold the 1/sqrt(d_keys) softmax scale into the Q projection.
    scale = 1.0 / math.sqrt(d_keys)
    packed = {
        "wq": wq * scale, "bq": (bq * scale).reshape(1, -1),
        "wk": wk,         "bk": bk.reshape(1, -1),
        "wv": wv,         "bv": bv.reshape(1, -1),
        "wo": wo,         "bo": bo.reshape(1, -1),
    }
    return {
        "q_proj": (wq, bq), "k_proj": (wk, bk),
        "v_proj": (wv, bv), "o_proj": (wo, bo),
        "packed": packed,
        "n_heads": n_heads, "d_keys": d_keys, "d_values": d_values,
    }


def attention_layer_forward(params, queries, keys, values, attn_mask=None,
                            mix=False, output_attention=True):
    """queries:(B,L,d_model) keys/values:(B,S,d_model) -> (B,L,d_model), attn."""
    # TODO(synk): attn_mask is ignored (FullAttention mask_flag=False path);
    # a causal/padding mask would be applied to the scores in-kernel.
    del attn_mask

    B, L, Dm = queries.shape
    S = keys.shape[1]
    H = params["n_heads"]
    dk, dv = params["d_keys"], params["d_values"]
    Hdk, Hdv = H * dk, H * dv

    p = params["packed"]
    args = (queries, keys, values,
            p["wq"], p["wk"], p["wv"], p["bq"], p["bk"], p["bv"],
            p["wo"], p["bo"])

    in_specs = [
        pl.BlockSpec((None, L, Dm), lambda b: (b, 0, 0)),
        pl.BlockSpec((None, S, Dm), lambda b: (b, 0, 0)),
        pl.BlockSpec((None, S, Dm), lambda b: (b, 0, 0)),
        # Weights/biases: constant block index -> fetched once, VMEM-resident.
        pl.BlockSpec((Dm, Hdk), lambda b: (0, 0)),
        pl.BlockSpec((Dm, Hdk), lambda b: (0, 0)),
        pl.BlockSpec((Dm, Hdv), lambda b: (0, 0)),
        pl.BlockSpec((1, Hdk), lambda b: (0, 0)),
        pl.BlockSpec((1, Hdk), lambda b: (0, 0)),
        pl.BlockSpec((1, Hdv), lambda b: (0, 0)),
        pl.BlockSpec((Hdv, Dm), lambda b: (0, 0)),
        pl.BlockSpec((1, Dm), lambda b: (0, 0)),
    ]
    y_spec = pl.BlockSpec((None, L, Dm), lambda b: (b, 0, 0))
    y_shape = jax.ShapeDtypeStruct((B, L, Dm), jnp.float32)
    cp = pltpu.CompilerParams(
        dimension_semantics=("parallel",),
        vmem_limit_bytes=_vmem_limit_bytes(),
    )
    static = dict(H=H, dk=dk, dv=dv, mix=mix, output_attention=output_attention)

    if output_attention:
        # TODO(synk): the (B,H,L,S) f32 map is the dominant quadratic HBM
        # writeback; emit bf16 (or skip) in production — f32 kept for the
        # 1e-5 reference check.
        a_spec = pl.BlockSpec((None, H, L, S), lambda b: (b, 0, 0, 0))
        a_shape = jax.ShapeDtypeStruct((B, H, L, S), jnp.float32)
        y, attn = pl.pallas_call(
            partial(_fused_kernel_with_map, **static),
            out_shape=(y_shape, a_shape),
            grid_spec=pltpu.PrefetchScalarGridSpec(
                num_scalar_prefetch=0, grid=(B,),
                in_specs=in_specs, out_specs=[y_spec, a_spec]),
            compiler_params=cp,
        )(*args)
        return y, attn

    y = pl.pallas_call(
        partial(_fused_kernel_no_map, **static),
        out_shape=y_shape,
        grid_spec=pltpu.PrefetchScalarGridSpec(
            num_scalar_prefetch=0, grid=(B,),
            in_specs=in_specs, out_specs=y_spec),
        compiler_params=cp,
    )(*args)
    return y, None


# ----------------------------------------------------------------------------
# main
# ----------------------------------------------------------------------------
if __name__ == "__main__":
    key = jax.random.PRNGKey(0)
    kp, kq, kk, kv = jax.random.split(key, 4)

    B, L, S = 2, 8, 8
    d_model, n_heads = 32, 4

    params = init_attention_layer_params(kp, d_model, n_heads)

    queries = jax.random.normal(kq, (B, L, d_model), jnp.float32)
    keys = jax.random.normal(kk, (B, S, d_model), jnp.float32)
    values = jax.random.normal(kv, (B, S, d_model), jnp.float32)

    out, attn = attention_layer_forward(params, queries, keys, values,
                                        attn_mask=None, output_attention=True)
    jax.block_until_ready(out)
    jax.block_until_ready(attn)

    # pure-JAX reference (matches the PyTorch module semantics)
    def ref_forward(params, queries, keys, values):
        H, dk, dv = params["n_heads"], params["d_keys"], params["d_values"]
        wq, bq = params["q_proj"]; wk, bk = params["k_proj"]
        wv, bv = params["v_proj"]; wo, bo = params["o_proj"]
        Bq, Lq, Dm = queries.shape
        Sq = keys.shape[1]
        q = (queries @ wq + bq).reshape(Bq, Lq, H, dk)
        k = (keys @ wk + bk).reshape(Bq, Sq, H, dk)
        v = (values @ wv + bv).reshape(Bq, Sq, H, dv)
        scores = jnp.einsum("blhe,bshe->bhls", q, k) / math.sqrt(dk)
        a = jax.nn.softmax(scores, axis=-1)
        o = jnp.einsum("bhls,bshd->blhd", a, v).reshape(Bq, Lq, H * dv)
        return o @ wo + bo, a

    ref_out, ref_attn = ref_forward(params, queries, keys, values)
    assert jnp.allclose(out, ref_out, atol=1e-4, rtol=1e-4)
    assert jnp.allclose(attn, ref_attn, atol=1e-5, rtol=1e-5)

    # exercise the no-map path (approx reciprocal) — looser tolerance.
    out_nm, attn_nm = attention_layer_forward(params, queries, keys, values,
                                              attn_mask=None,
                                              output_attention=False)
    jax.block_until_ready(out_nm)
    assert attn_nm is None
    assert jnp.allclose(out_nm, ref_out, atol=5e-2, rtol=5e-2)

    print("KERNEL_OK")
</pallas_src>

<mosaic_0001>
module attributes {stable_mosaic.version = 11 : i64} {
  func.func @_fused_kernel_with_map(%arg0: i32, %arg1: memref<1x8x32xf32, #tpu.memory_space<vmem>>, %arg2: memref<1x8x32xf32, #tpu.memory_space<vmem>>, %arg3: memref<1x8x32xf32, #tpu.memory_space<vmem>>, %arg4: memref<32x32xf32, #tpu.memory_space<vmem>>, %arg5: memref<32x32xf32, #tpu.memory_space<vmem>>, %arg6: memref<32x32xf32, #tpu.memory_space<vmem>>, %arg7: memref<1x32xf32, #tpu.memory_space<vmem>>, %arg8: memref<1x32xf32, #tpu.memory_space<vmem>>, %arg9: memref<1x32xf32, #tpu.memory_space<vmem>>, %arg10: memref<32x32xf32, #tpu.memory_space<vmem>>, %arg11: memref<1x32xf32, #tpu.memory_space<vmem>>, %arg12: memref<1x8x32xf32, #tpu.memory_space<vmem>>, %arg13: memref<1x4x8x8xf32, #tpu.memory_space<vmem>>) attributes {dimension_semantics = [#tpu.dimension_semantics<parallel>], iteration_bounds = array<i64: 2>, scalar_prefetch = 0 : i64, scratch_operands = 0 : i64, tpu.core_type = #tpu.core_type<tc>, window_params = [{transform_indices = @transform_0, window_bounds = array<i64: 1, 8, 32>}, {transform_indices = @transform_1, window_bounds = array<i64: 1, 8, 32>}, {transform_indices = @transform_2, window_bounds = array<i64: 1, 8, 32>}, {pipeline_mode = #tpu.pipeline_mode<synchronous>, transform_indices = @transform_3, window_bounds = array<i64: 32, 32>}, {pipeline_mode = #tpu.pipeline_mode<synchronous>, transform_indices = @transform_4, window_bounds = array<i64: 32, 32>}, {pipeline_mode = #tpu.pipeline_mode<synchronous>, transform_indices = @transform_5, window_bounds = array<i64: 32, 32>}, {pipeline_mode = #tpu.pipeline_mode<synchronous>, transform_indices = @transform_6, window_bounds = array<i64: 1, 32>}, {pipeline_mode = #tpu.pipeline_mode<synchronous>, transform_indices = @transform_7, window_bounds = array<i64: 1, 32>}, {pipeline_mode = #tpu.pipeline_mode<synchronous>, transform_indices = @transform_8, window_bounds = array<i64: 1, 32>}, {pipeline_mode = #tpu.pipeline_mode<synchronous>, transform_indices = @transform_9, window_bounds = array<i64: 32, 32>}, {pipeline_mode = #tpu.pipeline_mode<synchronous>, transform_indices = @transform_10, window_bounds = array<i64: 1, 32>}, {transform_indices = @transform_11, window_bounds = array<i64: 1, 8, 32>}, {transform_indices = @transform_12, window_bounds = array<i64: 1, 4, 8, 8>}]} {
    %c0 = arith.constant 0 : index
    %c0_0 = arith.constant 0 : index
    %c0_1 = arith.constant 0 : index
    %0 = vector.load %arg1[%c0, %c0_0, %c0_1] : memref<1x8x32xf32, #tpu.memory_space<vmem>>, vector<1x8x32xf32>
    %1 = vector.shape_cast %0 : vector<1x8x32xf32> to vector<8x32xf32>
    %c0_2 = arith.constant 0 : index
    %c0_3 = arith.constant 0 : index
    %2 = vector.load %arg4[%c0_2, %c0_3] : memref<32x32xf32, #tpu.memory_space<vmem>>, vector<32x32xf32>
    %cst = arith.constant dense<0.000000e+00> : vector<8x32xf32>
    %3 = tpu.matmul %1, %2, %cst {dimension_numbers = #tpu.dot_dimension_numbers<[1], [0], [0], [1], [0, 0, 1, 1], [], []>} : vector<8x32xf32>, vector<32x32xf32>, vector<8x32xf32> -> vector<8x32xf32>
    %c0_4 = arith.constant 0 : index
    %c0_5 = arith.constant 0 : index
    %4 = vector.load %arg7[%c0_4, %c0_5] : memref<1x32xf32, #tpu.memory_space<vmem>>, vector<1x32xf32>
    %5 = vector.broadcast %4 : vector<1x32xf32> to vector<8x32xf32>
    %6 = arith.addf %3, %5 : vector<8x32xf32>
    %c0_6 = arith.constant 0 : index
    %c0_7 = arith.constant 0 : index
    %c0_8 = arith.constant 0 : index
    %7 = vector.load %arg2[%c0_6, %c0_7, %c0_8] : memref<1x8x32xf32, #tpu.memory_space<vmem>>, vector<1x8x32xf32>
    %8 = vector.shape_cast %7 : vector<1x8x32xf32> to vector<8x32xf32>
    %c0_9 = arith.constant 0 : index
    %c0_10 = arith.constant 0 : index
    %9 = vector.load %arg5[%c0_9, %c0_10] : memref<32x32xf32, #tpu.memory_space<vmem>>, vector<32x32xf32>
    %cst_11 = arith.constant dense<0.000000e+00> : vector<8x32xf32>
    %10 = tpu.matmul %8, %9, %cst_11 {dimension_numbers = #tpu.dot_dimension_numbers<[1], [0], [0], [1], [0, 0, 1, 1], [], []>} : vector<8x32xf32>, vector<32x32xf32>, vector<8x32xf32> -> vector<8x32xf32>
    %c0_12 = arith.constant 0 : index
    %c0_13 = arith.constant 0 : index
    %11 = vector.load %arg8[%c0_12, %c0_13] : memref<1x32xf32, #tpu.memory_space<vmem>>, vector<1x32xf32>
    %12 = vector.broadcast %11 : vector<1x32xf32> to vector<8x32xf32>
    %13 = arith.addf %10, %12 : vector<8x32xf32>
    %c0_14 = arith.constant 0 : index
    %c0_15 = arith.constant 0 : index
    %c0_16 = arith.constant 0 : index
    %14 = vector.load %arg3[%c0_14, %c0_15, %c0_16] : memref<1x8x32xf32, #tpu.memory_space<vmem>>, vector<1x8x32xf32>
    %15 = vector.shape_cast %14 : vector<1x8x32xf32> to vector<8x32xf32>
    %c0_17 = arith.constant 0 : index
    %c0_18 = arith.constant 0 : index
    %16 = vector.load %arg6[%c0_17, %c0_18] : memref<32x32xf32, #tpu.memory_space<vmem>>, vector<32x32xf32>
    %cst_19 = arith.constant dense<0.000000e+00> : vector<8x32xf32>
    %17 = tpu.matmul %15, %16, %cst_19 {dimension_numbers = #tpu.dot_dimension_numbers<[1], [0], [0], [1], [0, 0, 1, 1], [], []>} : vector<8x32xf32>, vector<32x32xf32>, vector<8x32xf32> -> vector<8x32xf32>
    %c0_20 = arith.constant 0 : index
    %c0_21 = arith.constant 0 : index
    %18 = vector.load %arg9[%c0_20, %c0_21] : memref<1x32xf32, #tpu.memory_space<vmem>>, vector<1x32xf32>
    %19 = vector.broadcast %18 : vector<1x32xf32> to vector<8x32xf32>
    %20 = arith.addf %17, %19 : vector<8x32xf32>
    %21 = vector.extract_strided_slice %6 {offsets = [0, 0], sizes = [8, 8], strides = [1, 1]} : vector<8x32xf32> to vector<8x8xf32>
    %22 = vector.extract_strided_slice %13 {offsets = [0, 0], sizes = [8, 8], strides = [1, 1]} : vector<8x32xf32> to vector<8x8xf32>
    %23 = vector.extract_strided_slice %20 {offsets = [0, 0], sizes = [8, 8], strides = [1, 1]} : vector<8x32xf32> to vector<8x8xf32>
    %cst_22 = arith.constant dense<0.000000e+00> : vector<8x8xf32>
    %24 = tpu.matmul %21, %22, %cst_22 {dimension_numbers = #tpu.dot_dimension_numbers<[1], [1], [0], [0], [0, 0, 1, 0], [], []>} : vector<8x8xf32>, vector<8x8xf32>, vector<8x8xf32> -> vector<8x8xf32>
    %cst_23 = arith.constant dense<0xFF800000> : vector<8xf32>
    %25 = vector.multi_reduction <maximumf>, %24, %cst_23 [1] : vector<8x8xf32> to vector<8xf32>
    %26 = vector.shape_cast %25 : vector<8xf32> to vector<8x1xf32>
    %27 = vector.broadcast %26 : vector<8x1xf32> to vector<8x8xf32>
    %28 = arith.subf %24, %27 : vector<8x8xf32>
    %29 = math.exp %28 : vector<8x8xf32>
    %cst_24 = arith.constant dense<0.000000e+00> : vector<8xf32>
    %30 = vector.multi_reduction <add>, %29, %cst_24 [1] : vector<8x8xf32> to vector<8xf32>
    %31 = vector.shape_cast %30 : vector<8xf32> to vector<8x1xf32>
    %32 = tpu.reciprocal %31 : vector<8x1xf32> -> vector<8x1xf32>
    %33 = vector.broadcast %32 : vector<8x1xf32> to vector<8x8xf32>
    %34 = arith.mulf %29, %33 : vector<8x8xf32>
    %c0_25 = arith.constant 0 : index
    %c0_26 = arith.constant 0 : index
    %c0_27 = arith.constant 0 : index
    %c0_28 = arith.constant 0 : index
    %35 = vector.load %arg13[%c0_25, %c0_26, %c0_27, %c0_28] : memref<1x4x8x8xf32, #tpu.memory_space<vmem>>, vector<1x1x8x8xf32>
    %36 = vector.shape_cast %35 : vector<1x1x8x8xf32> to vector<8x8xf32>
    %37 = vector.shape_cast %34 : vector<8x8xf32> to vector<1x1x8x8xf32>
    tpu.vector_store %arg13[%c0_25, %c0_26, %c0_27, %c0_28], %37 {strides = array<i32>} : memref<1x4x8x8xf32, #tpu.memory_space<vmem>>, vector<1x1x8x8xf32>,
    %cst_29 = arith.constant dense<0.000000e+00> : vector<8x8xf32>
    %38 = tpu.matmul %34, %23, %cst_29 {dimension_numbers = #tpu.dot_dimension_numbers<[1], [0], [0], [1], [0, 0, 1, 1], [], []>} : vector<8x8xf32>, vector<8x8xf32>, vector<8x8xf32> -> vector<8x8xf32>
    %39 = vector.extract_strided_slice %6 {offsets = [0, 8], sizes = [8, 8], strides = [1, 1]} : vector<8x32xf32> to vector<8x8xf32>
    %40 = vector.extract_strided_slice %13 {offsets = [0, 8], sizes = [8, 8], strides = [1, 1]} : vector<8x32xf32> to vector<8x8xf32>
    %41 = vector.extract_strided_slice %20 {offsets = [0, 8], sizes = [8, 8], strides = [1, 1]} : vector<8x32xf32> to vector<8x8xf32>
    %cst_30 = arith.constant dense<0.000000e+00> : vector<8x8xf32>
    %42 = tpu.matmul %39, %40, %cst_30 {dimension_numbers = #tpu.dot_dimension_numbers<[1], [1], [0], [0], [0, 0, 1, 0], [], []>} : vector<8x8xf32>, vector<8x8xf32>, vector<8x8xf32> -> vector<8x8xf32>
    %cst_31 = arith.constant dense<0xFF800000> : vector<8xf32>
    %43 = vector.multi_reduction <maximumf>, %42, %cst_31 [1] : vector<8x8xf32> to vector<8xf32>
    %44 = vector.shape_cast %43 : vector<8xf32> to vector<8x1xf32>
    %45 = vector.broadcast %44 : vector<8x1xf32> to vector<8x8xf32>
    %46 = arith.subf %42, %45 : vector<8x8xf32>
    %47 = math.exp %46 : vector<8x8xf32>
    %cst_32 = arith.constant dense<0.000000e+00> : vector<8xf32>
    %48 = vector.multi_reduction <add>, %47, %cst_32 [1] : vector<8x8xf32> to vector<8xf32>
    %49 = vector.shape_cast %48 : vector<8xf32> to vector<8x1xf32>
    %50 = tpu.reciprocal %49 : vector<8x1xf32> -> vector<8x1xf32>
    %51 = vector.broadcast %50 : vector<8x1xf32> to vector<8x8xf32>
    %52 = arith.mulf %47, %51 : vector<8x8xf32>
    %c0_33 = arith.constant 0 : index
    %c1 = arith.constant 1 : index
    %c0_34 = arith.constant 0 : index
    %c0_35 = arith.constant 0 : index
    %53 = vector.load %arg13[%c0_33, %c1, %c0_34, %c0_35] : memref<1x4x8x8xf32, #tpu.memory_space<vmem>>, vector<1x1x8x8xf32>
    %54 = vector.shape_cast %53 : vector<1x1x8x8xf32> to vector<8x8xf32>
    %55 = vector.shape_cast %52 : vector<8x8xf32> to vector<1x1x8x8xf32>
    tpu.vector_store %arg13[%c0_33, %c1, %c0_34, %c0_35], %55 {strides = array<i32>} : memref<1x4x8x8xf32, #tpu.memory_space<vmem>>, vector<1x1x8x8xf32>,
    %cst_36 = arith.constant dense<0.000000e+00> : vector<8x8xf32>
    %56 = tpu.matmul %52, %41, %cst_36 {dimension_numbers = #tpu.dot_dimension_numbers<[1], [0], [0], [1], [0, 0, 1, 1], [], []>} : vector<8x8xf32>, vector<8x8xf32>, vector<8x8xf32> -> vector<8x8xf32>
    %57 = vector.extract_strided_slice %6 {offsets = [0, 16], sizes = [8, 8], strides = [1, 1]} : vector<8x32xf32> to vector<8x8xf32>
    %58 = vector.extract_strided_slice %13 {offsets = [0, 16], sizes = [8, 8], strides = [1, 1]} : vector<8x32xf32> to vector<8x8xf32>
    %59 = vector.extract_strided_slice %20 {offsets = [0, 16], sizes = [8, 8], strides = [1, 1]} : vector<8x32xf32> to vector<8x8xf32>
    %cst_37 = arith.constant dense<0.000000e+00> : vector<8x8xf32>
    %60 = tpu.matmul %57, %58, %cst_37 {dimension_numbers = #tpu.dot_dimension_numbers<[1], [1], [0], [0], [0, 0, 1, 0], [], []>} : vector<8x8xf32>, vector<8x8xf32>, vector<8x8xf32> -> vector<8x8xf32>
    %cst_38 = arith.constant dense<0xFF800000> : vector<8xf32>
    %61 = vector.multi_reduction <maximumf>, %60, %cst_38 [1] : vector<8x8xf32> to vector<8xf32>
    %62 = vector.shape_cast %61 : vector<8xf32> to vector<8x1xf32>
    %63 = vector.broadcast %62 : vector<8x1xf32> to vector<8x8xf32>
    %64 = arith.subf %60, %63 : vector<8x8xf32>
    %65 = math.exp %64 : vector<8x8xf32>
    %cst_39 = arith.constant dense<0.000000e+00> : vector<8xf32>
    %66 = vector.multi_reduction <add>, %65, %cst_39 [1] : vector<8x8xf32> to vector<8xf32>
    %67 = vector.shape_cast %66 : vector<8xf32> to vector<8x1xf32>
    %68 = tpu.reciprocal %67 : vector<8x1xf32> -> vector<8x1xf32>
    %69 = vector.broadcast %68 : vector<8x1xf32> to vector<8x8xf32>
    %70 = arith.mulf %65, %69 : vector<8x8xf32>
    %c0_40 = arith.constant 0 : index
    %c2 = arith.constant 2 : index
    %c0_41 = arith.constant 0 : index
    %c0_42 = arith.constant 0 : index
    %71 = vector.load %arg13[%c0_40, %c2, %c0_41, %c0_42] : memref<1x4x8x8xf32, #tpu.memory_space<vmem>>, vector<1x1x8x8xf32>
    %72 = vector.shape_cast %71 : vector<1x1x8x8xf32> to vector<8x8xf32>
    %73 = vector.shape_cast %70 : vector<8x8xf32> to vector<1x1x8x8xf32>
    tpu.vector_store %arg13[%c0_40, %c2, %c0_41, %c0_42], %73 {strides = array<i32>} : memref<1x4x8x8xf32, #tpu.memory_space<vmem>>, vector<1x1x8x8xf32>,
    %cst_43 = arith.constant dense<0.000000e+00> : vector<8x8xf32>
    %74 = tpu.matmul %70, %59, %cst_43 {dimension_numbers = #tpu.dot_dimension_numbers<[1], [0], [0], [1], [0, 0, 1, 1], [], []>} : vector<8x8xf32>, vector<8x8xf32>, vector<8x8xf32> -> vector<8x8xf32>
    %75 = vector.extract_strided_slice %6 {offsets = [0, 24], sizes = [8, 8], strides = [1, 1]} : vector<8x32xf32> to vector<8x8xf32>
    %76 = vector.extract_strided_slice %13 {offsets = [0, 24], sizes = [8, 8], strides = [1, 1]} : vector<8x32xf32> to vector<8x8xf32>
    %77 = vector.extract_strided_slice %20 {offsets = [0, 24], sizes = [8, 8], strides = [1, 1]} : vector<8x32xf32> to vector<8x8xf32>
    %cst_44 = arith.constant dense<0.000000e+00> : vector<8x8xf32>
    %78 = tpu.matmul %75, %76, %cst_44 {dimension_numbers = #tpu.dot_dimension_numbers<[1], [1], [0], [0], [0, 0, 1, 0], [], []>} : vector<8x8xf32>, vector<8x8xf32>, vector<8x8xf32> -> vector<8x8xf32>
    %cst_45 = arith.constant dense<0xFF800000> : vector<8xf32>
    %79 = vector.multi_reduction <maximumf>, %78, %cst_45 [1] : vector<8x8xf32> to vector<8xf32>
    %80 = vector.shape_cast %79 : vector<8xf32> to vector<8x1xf32>
    %81 = vector.broadcast %80 : vector<8x1xf32> to vector<8x8xf32>
    %82 = arith.subf %78, %81 : vector<8x8xf32>
    %83 = math.exp %82 : vector<8x8xf32>
    %cst_46 = arith.constant dense<0.000000e+00> : vector<8xf32>
    %84 = vector.multi_reduction <add>, %83, %cst_46 [1] : vector<8x8xf32> to vector<8xf32>
    %85 = vector.shape_cast %84 : vector<8xf32> to vector<8x1xf32>
    %86 = tpu.reciprocal %85 : vector<8x1xf32> -> vector<8x1xf32>
    %87 = vector.broadcast %86 : vector<8x1xf32> to vector<8x8xf32>
    %88 = arith.mulf %83, %87 : vector<8x8xf32>
    %c0_47 = arith.constant 0 : index
    %c3 = arith.constant 3 : index
    %c0_48 = arith.constant 0 : index
    %c0_49 = arith.constant 0 : index
    %89 = vector.load %arg13[%c0_47, %c3, %c0_48, %c0_49] : memref<1x4x8x8xf32, #tpu.memory_space<vmem>>, vector<1x1x8x8xf32>
    %90 = vector.shape_cast %89 : vector<1x1x8x8xf32> to vector<8x8xf32>
    %91 = vector.shape_cast %88 : vector<8x8xf32> to vector<1x1x8x8xf32>
    tpu.vector_store %arg13[%c0_47, %c3, %c0_48, %c0_49], %91 {strides = array<i32>} : memref<1x4x8x8xf32, #tpu.memory_space<vmem>>, vector<1x1x8x8xf32>,
    %cst_50 = arith.constant dense<0.000000e+00> : vector<8x8xf32>
    %92 = tpu.matmul %88, %77, %cst_50 {dimension_numbers = #tpu.dot_dimension_numbers<[1], [0], [0], [1], [0, 0, 1, 1], [], []>} : vector<8x8xf32>, vector<8x8xf32>, vector<8x8xf32> -> vector<8x8xf32>
    %93 = tpu.concatenate %38, %56, %74, %92 in 1 : vector<8x8xf32>, vector<8x8xf32>, vector<8x8xf32>, vector<8x8xf32> -> vector<8x32xf32>
    %c0_51 = arith.constant 0 : index
    %c0_52 = arith.constant 0 : index
    %94 = vector.load %arg10[%c0_51, %c0_52] : memref<32x32xf32, #tpu.memory_space<vmem>>, vector<32x32xf32>
    %cst_53 = arith.constant dense<0.000000e+00> : vector<8x32xf32>
    %95 = tpu.matmul %93, %94, %cst_53 {dimension_numbers = #tpu.dot_dimension_numbers<[1], [0], [0], [1], [0, 0, 1, 1], [], []>} : vector<8x32xf32>, vector<32x32xf32>, vector<8x32xf32> -> vector<8x32xf32>
    %c0_54 = arith.constant 0 : index
    %c0_55 = arith.constant 0 : index
    %96 = vector.load %arg11[%c0_54, %c0_55] : memref<1x32xf32, #tpu.memory_space<vmem>>, vector<1x32xf32>
    %97 = vector.broadcast %96 : vector<1x32xf32> to vector<8x32xf32>
    %98 = arith.addf %95, %97 : vector<8x32xf32>
    %c0_56 = arith.constant 0 : index
    %c0_57 = arith.constant 0 : index
    %c0_58 = arith.constant 0 : index
    %99 = vector.load %arg12[%c0_56, %c0_57, %c0_58] : memref<1x8x32xf32, #tpu.memory_space<vmem>>, vector<1x8x32xf32>
    %100 = vector.shape_cast %99 : vector<1x8x32xf32> to vector<8x32xf32>
    %101 = vector.shape_cast %98 : vector<8x32xf32> to vector<1x8x32xf32>
    tpu.vector_store %arg12[%c0_56, %c0_57, %c0_58], %101 {strides = array<i32>} : memref<1x8x32xf32, #tpu.memory_space<vmem>>, vector<1x8x32xf32>,
    return
  }
  func.func @transform_0(%arg0: i32) -> (i32, i32, i32) {
    %c0_i32 = arith.constant 0 : i32
    %c0_i32_0 = arith.constant 0 : i32
    %c0_i32_1 = arith.constant 0 : i32
    return %arg0, %c0_i32, %c0_i32_0 : i32, i32, i32
  }
  func.func @transform_1(%arg0: i32) -> (i32, i32, i32) {
    %c0_i32 = arith.constant 0 : i32
    %c0_i32_0 = arith.constant 0 : i32
    %c0_i32_1 = arith.constant 0 : i32
    return %arg0, %c0_i32, %c0_i32_0 : i32, i32, i32
  }
  func.func @transform_2(%arg0: i32) -> (i32, i32, i32) {
    %c0_i32 = arith.constant 0 : i32
    %c0_i32_0 = arith.constant 0 : i32
    %c0_i32_1 = arith.constant 0 : i32
    return %arg0, %c0_i32, %c0_i32_0 : i32, i32, i32
  }
  func.func @transform_3(%arg0: i32) -> (i32, i32) {
    %c0_i32 = arith.constant 0 : i32
    %c0_i32_0 = arith.constant 0 : i32
    %c0_i32_1 = arith.constant 0 : i32
    return %c0_i32, %c0_i32_0 : i32, i32
  }
  func.func @transform_4(%arg0: i32) -> (i32, i32) {
    %c0_i32 = arith.constant 0 : i32
    %c0_i32_0 = arith.constant 0 : i32
    %c0_i32_1 = arith.constant 0 : i32
    return %c0_i32, %c0_i32_0 : i32, i32
  }
  func.func @transform_5(%arg0: i32) -> (i32, i32) {
    %c0_i32 = arith.constant 0 : i32
    %c0_i32_0 = arith.constant 0 : i32
    %c0_i32_1 = arith.constant 0 : i32
    return %c0_i32, %c0_i32_0 : i32, i32
  }
  func.func @transform_6(%arg0: i32) -> (i32, i32) {
    %c0_i32 = arith.constant 0 : i32
    %c0_i32_0 = arith.constant 0 : i32
    %c0_i32_1 = arith.constant 0 : i32
    return %c0_i32, %c0_i32_0 : i32, i32
  }
  func.func @transform_7(%arg0: i32) -> (i32, i32) {
    %c0_i32 = arith.constant 0 : i32
    %c0_i32_0 = arith.constant 0 : i32
    %c0_i32_1 = arith.constant 0 : i32
    return %c0_i32, %c0_i32_0 : i32, i32
  }
  func.func @transform_8(%arg0: i32) -> (i32, i32) {
    %c0_i32 = arith.constant 0 : i32
    %c0_i32_0 = arith.constant 0 : i32
    %c0_i32_1 = arith.constant 0 : i32
    return %c0_i32, %c0_i32_0 : i32, i32
  }
  func.func @transform_9(%arg0: i32) -> (i32, i32) {
    %c0_i32 = arith.constant 0 : i32
    %c0_i32_0 = arith.constant 0 : i32
    %c0_i32_1 = arith.constant 0 : i32
    return %c0_i32, %c0_i32_0 : i32, i32
  }
  func.func @transform_10(%arg0: i32) -> (i32, i32) {
    %c0_i32 = arith.constant 0 : i32
    %c0_i32_0 = arith.constant 0 : i32
    %c0_i32_1 = arith.constant 0 : i32
    return %c0_i32, %c0_i32_0 : i32, i32
  }
  func.func @transform_11(%arg0: i32) -> (i32, i32, i32) {
    %c0_i32 = arith.constant 0 : i32
    %c0_i32_0 = arith.constant 0 : i32
    %c0_i32_1 = arith.constant 0 : i32
    return %arg0, %c0_i32, %c0_i32_0 : i32, i32, i32
  }
  func.func @transform_12(%arg0: i32) -> (i32, i32, i32, i32) {
    %c0_i32 = arith.constant 0 : i32
    %c0_i32_0 = arith.constant 0 : i32
    %c0_i32_1 = arith.constant 0 : i32
    %c0_i32_2 = arith.constant 0 : i32
    return %arg0, %c0_i32, %c0_i32_0, %c0_i32_1 : i32, i32, i32, i32
  }
}

</mosaic_0001>

<llo_original>
// kernel: tpu_custom_call.1
$region0: #{tpu_custom_call.1}
  #allocation0 [shape = 'u32[]', space=smem, size = 0x4, offset = 0x4, fixed_abs, tag = 'smem constant byte address 0x4 - core index']
  #allocation1 [shape = 'u32[144,128]{1,0:T(1,128)}', space=vmem, size = 0x12000, scoped, tag = 'internal scratch']
  %s0 = inlined_call_operand.hbm [shape: f32[2,8,32], index: 0, kind: input, shape index: {}]
  %s1 = inlined_call_operand.hbm [shape: f32[2,8,32], index: 1, kind: input, shape index: {}]
  %s2 = inlined_call_operand.hbm [shape: f32[2,8,32], index: 2, kind: input, shape index: {}]
  %s3 = inlined_call_operand.hbm [shape: f32[32,32], index: 3, kind: input, shape index: {}]
  %s4 = inlined_call_operand.hbm [shape: f32[32,32], index: 4, kind: input, shape index: {}]
  %s5 = inlined_call_operand.hbm [shape: f32[32,32], index: 5, kind: input, shape index: {}]
  %s6 = inlined_call_operand.vmem [shape: f32[1,32], index: 6, kind: input, shape index: {}]
  %s7 = inlined_call_operand.vmem [shape: f32[1,32], index: 7, kind: input, shape index: {}]
  %s8 = inlined_call_operand.hbm [shape: f32[1,32], index: 8, kind: input, shape index: {}]
  %s9 = inlined_call_operand.vmem [shape: f32[32,32], index: 9, kind: input, shape index: {}]
  %s10 = inlined_call_operand.vmem [shape: f32[1,32], index: 10, kind: input, shape index: {}]
  %s11 = inlined_call_operand.hbm [shape: f32[2,8,32], index: 11, kind: output, shape index: {0}]
  %s12 = inlined_call_operand.hbm [shape: f32[2,4,8,8], index: 12, kind: output, shape index: {1}]
  %13 = xla_tuple %s11, %s12
  %s14 = sld [smem:[#allocation0]]
  $region113: #{tpu_custom_call.1} parent=0
    _
  %s16 = ssub.s32 1, %s14
  %s17 = scalar_select 0, %s16, %s14
  $region1: #{tpu_custom_call.1} parent=0
    #allocation2 [shape = 'u8[8192]{0}', space=vmem, size = 0x2000, scoped, tag = 'input window, operand 0']
    #allocation3 [shape = 's32[2]{0}', space=sflag, size = 0x8, scoped, tag = 'scoped memory for tpu_custom_call.1']
    #allocation4 [shape = 's32[2]{0}', space=sflag, size = 0x8, scoped, tag = 'scoped memory for tpu_custom_call.1']
    #allocation5 [shape = 'u8[8192]{0}', space=vmem, size = 0x2000, scoped, tag = 'input window, operand 1']
    #allocation6 [shape = 's32[2]{0}', space=sflag, size = 0x8, scoped, tag = 'scoped memory for tpu_custom_call.1']
    #allocation7 [shape = 'u8[8192]{0}', space=vmem, size = 0x2000, scoped, tag = 'input window, operand 2']
    #allocation8 [shape = 'u8[16384]{0}', space=vmem, size = 0x4000, scoped, tag = 'input window, operand 3, single buffered']
    #allocation9 [shape = 's32[1]{0}', space=sflag, size = 0x4, scoped, tag = 'scoped memory for tpu_custom_call.1']
    #allocation10 [shape = 'u8[16384]{0}', space=vmem, size = 0x4000, scoped, tag = 'input window, operand 4, single buffered']
    #allocation11 [shape = 'u8[16384]{0}', space=vmem, size = 0x4000, scoped, tag = 'input window, operand 5, single buffered']
    #allocation12 [shape = 's32[1]{0}', space=sflag, size = 0x4, scoped, tag = 'scoped memory for tpu_custom_call.1']
    #allocation13 [shape = 'u8[512]{0}', space=vmem, size = 0x400, scoped, tag = 'input window, operand 8, single buffered']
    #allocation14 [shape = 'u8[8192]{0}', space=vmem, size = 0x2000, scoped, tag = 'output window, operand 0']
    #allocation15 [shape = 'u8[32768]{0}', space=vmem, size = 0x8000, scoped, tag = 'output window, operand 1']
    #allocation16 [shape = 's32[2]{0}', space=sflag, size = 0x8, scoped, tag = 'scoped memory for tpu_custom_call.1']
    %18 = vsyncpa [#allocation3], 0
    %s19 = scalar_lea.sflag [#allocation3], 1
    %20 = vsyncpa %s19, 0
    %21 = vsyncpa [#allocation6], 0
    %s22 = scalar_lea.sflag [#allocation6], 1
    %23 = vsyncpa %s22, 0
    %24 = vsyncpa [#allocation9], 0
    %25 = vsyncpa [#allocation12], 0
    %26 = vsyncpa [#allocation4], 0
    %s27 = scalar_lea.sflag [#allocation4], 1
    %28 = vsyncpa %s27, 0
    %29 = vsyncpa [#allocation16], 0
    %s30 = scalar_lea.sflag [#allocation16], 1
    %31 = vsyncpa %s30, 0
    loop: start=0, step=1, limit=4
    $region2: #{tpu_custom_call.1} parent=1 // loop_pre_header
      _
    $region3: #{tpu_custom_call.1} parent=1 // loop_header
      %s33 = sphi 0, %s37
      %p34 = scmp.ge.s32.totalorder %s33, 4
      %s43 = sphi 0, %s45
      %s46 = sphi 0, %s43
      %s47 = sphi 0, %s46
      %s63 = sphi 0, %s47
      %s69 = sphi 0, %s71
      %s72 = sphi 0, %s69
      %s73 = sphi 0, %s72
      %s89 = sphi 0, %s73
      %s95 = sphi 0, %s97
      %s98 = sphi 0, %s95
      %s99 = sphi 0, %s98
      %s115 = sphi 0, %s99
      %s119 = sphi 0, %s119
      %s121 = sphi 0, %s119
      %s122 = sphi 0, %s121
      %s136 = sphi 0, %s122
      %s140 = sphi 0, %s140
      %s142 = sphi 0, %s140
      %s143 = sphi 0, %s142
      %s157 = sphi 0, %s143
      %s161 = sphi 0, %s161
      %s163 = sphi 0, %s161
      %s164 = sphi 0, %s163
      %s178 = sphi 0, %s164
      %s182 = sphi 0, %s182
      %s184 = sphi 0, %s182
      %s185 = sphi 0, %s184
      %s199 = sphi 0, %s185
      %s203 = sphi 0, %s203
      %s205 = sphi 0, %s203
      %s206 = sphi 0, %s205
      %s220 = sphi 0, %s206
      %s224 = sphi 0, %s224
      %s226 = sphi 0, %s224
      %s227 = sphi 0, %s226
      %s241 = sphi 0, %s227
      %s245 = sphi 0, %s245
      %s247 = sphi 0, %s245
      %s248 = sphi 0, %s247
      %s262 = sphi 0, %s248
      %s266 = sphi 0, %s266
      %s268 = sphi 0, %s266
      %s269 = sphi 0, %s268
      %s283 = sphi 0, %s269
      %s289 = sphi 0, %s291
      %s292 = sphi 0, %s289
      %s293 = sphi 0, %s292
      %s309 = sphi 0, %s293
      %s315 = sphi 0, %s317
      %s318 = sphi 0, %s315
      %s319 = sphi 0, %s318
      %s335 = sphi 0, %s319
    $region4: #{tpu_custom_call.1} parent=1 // loop_header_branch
      %36 = sbr.rel (%p34) target = $region8
    $region5: #{tpu_custom_call.1} parent=1 // loop_body
      %s38 = ssub.s32 %s33, 1
      %s39 = ssub.s32 %s33, 2
      %s40 = sadd.s32 %s33, 1
      %s41 = ssub.s32 %s33, %s40
      %p42 = scmp.eq.s32.totalorder %s41, 0
      %s44 = sadd.s32 %s43, 1
      %s45 = scalar_select %p42, %s43, %s44
      %p48 = pneg %p42
      %p49 = scmp.eq.s32.totalorder %s33, 1
      %p50 = por %p48, %p49
      %p51 = scmp.ne.s32.totalorder %s43, %s46
      %p52 = scmp.eq.s32.totalorder %s33, 0
      %p53 = por %p51, %p52
      %p54 = scmp.ne.s32.totalorder %s43, %s46
      %p55 = scmp.eq.s32.totalorder %s38, 1
      %p56 = por %p54, %p55
      %p57 = scmp.ne.s32.totalorder %s46, %s47
      %p58 = scmp.eq.s32.totalorder %s38, 0
      %p59 = por %p57, %p58
      %p60 = scmp.ne.s32.totalorder %s46, %s47
      %p61 = scmp.eq.s32.totalorder %s39, 1
      %p62 = por %p60, %p61
      %p64 = scmp.ne.s32.totalorder %s47, %s63
      %p65 = scmp.eq.s32.totalorder %s39, 0
      %p66 = por %p64, %p65
      %s67 = ssub.s32 %s33, %s40
      %p68 = scmp.eq.s32.totalorder %s67, 0
      %s70 = sadd.s32 %s69, 1
      %s71 = scalar_select %p68, %s69, %s70
      %p74 = pneg %p68
      %p75 = scmp.eq.s32.totalorder %s33, 1
      %p76 = por %p74, %p75
      %p77 = scmp.ne.s32.totalorder %s69, %s72
      %p78 = scmp.eq.s32.totalorder %s33, 0
      %p79 = por %p77, %p78
      %p80 = scmp.ne.s32.totalorder %s69, %s72
      %p81 = scmp.eq.s32.totalorder %s38, 1
      %p82 = por %p80, %p81
      %p83 = scmp.ne.s32.totalorder %s72, %s73
      %p84 = scmp.eq.s32.totalorder %s38, 0
      %p85 = por %p83, %p84
      %p86 = scmp.ne.s32.totalorder %s72, %s73
      %p87 = scmp.eq.s32.totalorder %s39, 1
      %p88 = por %p86, %p87
      %p90 = scmp.ne.s32.totalorder %s73, %s89
      %p91 = scmp.eq.s32.totalorder %s39, 0
      %p92 = por %p90, %p91
      %s93 = ssub.s32 %s33, %s40
      %p94 = scmp.eq.s32.totalorder %s93, 0
      %s96 = sadd.s32 %s95, 1
      %s97 = scalar_select %p94, %s95, %s96
      %p100 = pneg %p94
      %p101 = scmp.eq.s32.totalorder %s33, 1
      %p102 = por %p100, %p101
      %p103 = scmp.ne.s32.totalorder %s95, %s98
      %p104 = scmp.eq.s32.totalorder %s33, 0
      %p105 = por %p103, %p104
      %p106 = scmp.ne.s32.totalorder %s95, %s98
      %p107 = scmp.eq.s32.totalorder %s38, 1
      %p108 = por %p106, %p107
      %p109 = scmp.ne.s32.totalorder %s98, %s99
      %p110 = scmp.eq.s32.totalorder %s38, 0
      %p111 = por %p109, %p110
      %p112 = scmp.ne.s32.totalorder %s98, %s99
      %p113 = scmp.eq.s32.totalorder %s39, 1
      %p114 = por %p112, %p113
      %p116 = scmp.ne.s32.totalorder %s99, %s115
      %p117 = scmp.eq.s32.totalorder %s39, 0
      %p118 = por %p116, %p117
      %s120 = sadd.s32 %s119, 1
      %p123 = scmp.eq.s32.totalorder %s33, 1
      %p124 = scmp.ne.s32.totalorder %s119, %s121
      %p125 = scmp.eq.s32.totalorder %s33, 0
      %p126 = por %p124, %p125
      %p127 = scmp.ne.s32.totalorder %s119, %s121
      %p128 = scmp.eq.s32.totalorder %s38, 1
      %p129 = por %p127, %p128
      %p130 = scmp.ne.s32.totalorder %s121, %s122
      %p131 = scmp.eq.s32.totalorder %s38, 0
      %p132 = por %p130, %p131
      %p133 = scmp.ne.s32.totalorder %s121, %s122
      %p134 = scmp.eq.s32.totalorder %s39, 1
      %p135 = por %p133, %p134
      %p137 = scmp.ne.s32.totalorder %s122, %s136
      %p138 = scmp.eq.s32.totalorder %s39, 0
      %p139 = por %p137, %p138
      %s141 = sadd.s32 %s140, 1
      %p144 = scmp.eq.s32.totalorder %s33, 1
      %p145 = scmp.ne.s32.totalorder %s140, %s142
      %p146 = scmp.eq.s32.totalorder %s33, 0
      %p147 = por %p145, %p146
      %p148 = scmp.ne.s32.totalorder %s140, %s142
      %p149 = scmp.eq.s32.totalorder %s38, 1
      %p150 = por %p148, %p149
      %p151 = scmp.ne.s32.totalorder %s142, %s143
      %p152 = scmp.eq.s32.totalorder %s38, 0
      %p153 = por %p151, %p152
      %p154 = scmp.ne.s32.totalorder %s142, %s143
      %p155 = scmp.eq.s32.totalorder %s39, 1
      %p156 = por %p154, %p155
      %p158 = scmp.ne.s32.totalorder %s143, %s157
      %p159 = scmp.eq.s32.totalorder %s39, 0
      %p160 = por %p158, %p159
      %s162 = sadd.s32 %s161, 1
      %p165 = scmp.eq.s32.totalorder %s33, 1
      %p166 = scmp.ne.s32.totalorder %s161, %s163
      %p167 = scmp.eq.s32.totalorder %s33, 0
      %p168 = por %p166, %p167
      %p169 = scmp.ne.s32.totalorder %s161, %s163
      %p170 = scmp.eq.s32.totalorder %s38, 1
      %p171 = por %p169, %p170
      %p172 = scmp.ne.s32.totalorder %s163, %s164
      %p173 = scmp.eq.s32.totalorder %s38, 0
      %p174 = por %p172, %p173
      %p175 = scmp.ne.s32.totalorder %s163, %s164
      %p176 = scmp.eq.s32.totalorder %s39, 1
      %p177 = por %p175, %p176
      %p179 = scmp.ne.s32.totalorder %s164, %s178
      %p180 = scmp.eq.s32.totalorder %s39, 0
      %p181 = por %p179, %p180
      %s183 = sadd.s32 %s182, 1
      %p186 = scmp.eq.s32.totalorder %s33, 1
      %p187 = scmp.ne.s32.totalorder %s182, %s184
      %p188 = scmp.eq.s32.totalorder %s33, 0
      %p189 = por %p187, %p188
      %p190 = scmp.ne.s32.totalorder %s182, %s184
      %p191 = scmp.eq.s32.totalorder %s38, 1
      %p192 = por %p190, %p191
      %p193 = scmp.ne.s32.totalorder %s184, %s185
      %p194 = scmp.eq.s32.totalorder %s38, 0
      %p195 = por %p193, %p194
      %p196 = scmp.ne.s32.totalorder %s184, %s185
      %p197 = scmp.eq.s32.totalorder %s39, 1
      %p198 = por %p196, %p197
      %p200 = scmp.ne.s32.totalorder %s185, %s199
      %p201 = scmp.eq.s32.totalorder %s39, 0
      %p202 = por %p200, %p201
      %s204 = sadd.s32 %s203, 1
      %p207 = scmp.eq.s32.totalorder %s33, 1
      %p208 = scmp.ne.s32.totalorder %s203, %s205
      %p209 = scmp.eq.s32.totalorder %s33, 0
      %p210 = por %p208, %p209
      %p211 = scmp.ne.s32.totalorder %s203, %s205
      %p212 = scmp.eq.s32.totalorder %s38, 1
      %p213 = por %p211, %p212
      %p214 = scmp.ne.s32.totalorder %s205, %s206
      %p215 = scmp.eq.s32.totalorder %s38, 0
      %p216 = por %p214, %p215
      %p217 = scmp.ne.s32.totalorder %s205, %s206
      %p218 = scmp.eq.s32.totalorder %s39, 1
      %p219 = por %p217, %p218
      %p221 = scmp.ne.s32.totalorder %s206, %s220
      %p222 = scmp.eq.s32.totalorder %s39, 0
      %p223 = por %p221, %p222
      %s225 = sadd.s32 %s224, 1
      %p228 = scmp.eq.s32.totalorder %s33, 1
      %p229 = scmp.ne.s32.totalorder %s224, %s226
      %p230 = scmp.eq.s32.totalorder %s33, 0
      %p231 = por %p229, %p230
      %p232 = scmp.ne.s32.totalorder %s224, %s226
      %p233 = scmp.eq.s32.totalorder %s38, 1
      %p234 = por %p232, %p233
      %p235 = scmp.ne.s32.totalorder %s226, %s227
      %p236 = scmp.eq.s32.totalorder %s38, 0
      %p237 = por %p235, %p236
      %p238 = scmp.ne.s32.totalorder %s226, %s227
      %p239 = scmp.eq.s32.totalorder %s39, 1
      %p240 = por %p238, %p239
      %p242 = scmp.ne.s32.totalorder %s227, %s241
      %p243 = scmp.eq.s32.totalorder %s39, 0
      %p244 = por %p242, %p243
      %s246 = sadd.s32 %s245, 1
      %p249 = scmp.eq.s32.totalorder %s33, 1
      %p250 = scmp.ne.s32.totalorder %s245, %s247
      %p251 = scmp.eq.s32.totalorder %s33, 0
      %p252 = por %p250, %p251
      %p253 = scmp.ne.s32.totalorder %s245, %s247
      %p254 = scmp.eq.s32.totalorder %s38, 1
      %p255 = por %p253, %p254
      %p256 = scmp.ne.s32.totalorder %s247, %s248
      %p257 = scmp.eq.s32.totalorder %s38, 0
      %p258 = por %p256, %p257
      %p259 = scmp.ne.s32.totalorder %s247, %s248
      %p260 = scmp.eq.s32.totalorder %s39, 1
      %p261 = por %p259, %p260
      %p263 = scmp.ne.s32.totalorder %s248, %s262
      %p264 = scmp.eq.s32.totalorder %s39, 0
      %p265 = por %p263, %p264
      %s267 = sadd.s32 %s266, 1
      %p270 = scmp.eq.s32.totalorder %s33, 1
      %p271 = scmp.ne.s32.totalorder %s266, %s268
      %p272 = scmp.eq.s32.totalorder %s33, 0
      %p273 = por %p271, %p272
      %p274 = scmp.ne.s32.totalorder %s266, %s268
      %p275 = scmp.eq.s32.totalorder %s38, 1
      %p276 = por %p274, %p275
      %p277 = scmp.ne.s32.totalorder %s268, %s269
      %p278 = scmp.eq.s32.totalorder %s38, 0
      %p279 = por %p277, %p278
      %p280 = scmp.ne.s32.totalorder %s268, %s269
      %p281 = scmp.eq.s32.totalorder %s39, 1
      %p282 = por %p280, %p281
      %p284 = scmp.ne.s32.totalorder %s269, %s283
      %p285 = scmp.eq.s32.totalorder %s39, 0
      %p286 = por %p284, %p285
      %s287 = ssub.s32 %s33, %s40
      %p288 = scmp.eq.s32.totalorder %s287, 0
      %s290 = sadd.s32 %s289, 1
      %s291 = scalar_select %p288, %s289, %s290
      %p294 = pneg %p288
      %p295 = scmp.eq.s32.totalorder %s33, 1
      %p296 = por %p294, %p295
      %p297 = scmp.ne.s32.totalorder %s289, %s292
      %p298 = scmp.eq.s32.totalorder %s33, 0
      %p299 = por %p297, %p298
      %p300 = scmp.ne.s32.totalorder %s289, %s292
      %p301 = scmp.eq.s32.totalorder %s38, 1
      %p302 = por %p300, %p301
      %p303 = scmp.ne.s32.totalorder %s292, %s293
      %p304 = scmp.eq.s32.totalorder %s38, 0
      %p305 = por %p303, %p304
      %p306 = scmp.ne.s32.totalorder %s292, %s293
      %p307 = scmp.eq.s32.totalorder %s39, 1
      %p308 = por %p306, %p307
      %p310 = scmp.ne.s32.totalorder %s293, %s309
      %p311 = scmp.eq.s32.totalorder %s39, 0
      %p312 = por %p310, %p311
      %s313 = ssub.s32 %s33, %s40
      %p314 = scmp.eq.s32.totalorder %s313, 0
      %s316 = sadd.s32 %s315, 1
      %s317 = scalar_select %p314, %s315, %s316
      %p320 = pneg %p314
      %p321 = scmp.eq.s32.totalorder %s33, 1
      %p322 = por %p320, %p321
      %p323 = scmp.ne.s32.totalorder %s315, %s318
      %p324 = scmp.eq.s32.totalorder %s33, 0
      %p325 = por %p323, %p324
      %p326 = scmp.ne.s32.totalorder %s315, %s318
      %p327 = scmp.eq.s32.totalorder %s38, 1
      %p328 = por %p326, %p327
      %p329 = scmp.ne.s32.totalorder %s318, %s319
      %p330 = scmp.eq.s32.totalorder %s38, 0
      %p331 = por %p329, %p330
      %p332 = scmp.ne.s32.totalorder %s318, %s319
      %p333 = scmp.eq.s32.totalorder %s39, 1
      %p334 = por %p332, %p333
      %p336 = scmp.ne.s32.totalorder %s319, %s335
      %p337 = scmp.eq.s32.totalorder %s39, 0
      %p338 = por %p336, %p337
      %p339 = scmp.le.s32.totalorder 1, %s33
      %p340 = scmp.lt.s32.totalorder %s33, 3
      %p341 = pnand %p339, %p340
      %p342 = pneg %p341
      // Predicated region
      $region9: #{tpu_custom_call.1} parent=5 // pred_check
        _
      $region10: #{tpu_custom_call.1} parent=5 // pred_check_branch
        %344 = sbr.rel (%p341) target = $region12
      $region11: #{tpu_custom_call.1} parent=5 // pred_region
        %s345 = ssub.s32 %s33, 1
        // Predicated region
        $region13: #{tpu_custom_call.1} parent=11 // pred_check
          %p346 = pneg %p132
        $region14: #{tpu_custom_call.1} parent=11 // pred_check_branch
          %348 = sbr.rel (%p346) target = $region16
        $region15: #{tpu_custom_call.1} parent=11 // pred_region
          %s350 = ssub.s32 512, 512
          %351 = vsyncadd [#allocation9], %s350
          %s352 = sshll.u32 [#allocation8], 4
          %s353 = int_to_ptr.vmem [resolvable:$true] %s352
          %358 = dma.hbm_to_vmem [thread:$0]  %s3, 512, %s353, [#allocation9], 128, 128, 8
        $region16: #{tpu_custom_call.1} parent=11 // pred_fallthru
          _
        // Predicated region
        $region17: #{tpu_custom_call.1} parent=11 // pred_check
          %p359 = pneg %p153
        $region18: #{tpu_custom_call.1} parent=11 // pred_check_branch
          %361 = sbr.rel (%p359) target = $region20
        $region19: #{tpu_custom_call.1} parent=11 // pred_region
          %s363 = ssub.s32 512, 512
          %364 = vsyncadd [#allocation9], %s363
          %s365 = sshll.u32 [#allocation10], 4
          %s366 = int_to_ptr.vmem [resolvable:$true] %s365
          %371 = dma.hbm_to_vmem [thread:$0]  %s4, 512, %s366, [#allocation9], 128, 128, 8
        $region20: #{tpu_custom_call.1} parent=11 // pred_fallthru
          _
        // Predicated region
        $region21: #{tpu_custom_call.1} parent=11 // pred_check
          %p372 = pneg %p174
        $region22: #{tpu_custom_call.1} parent=11 // pred_check_branch
          %374 = sbr.rel (%p372) target = $region24
        $region23: #{tpu_custom_call.1} parent=11 // pred_region
          %s376 = ssub.s32 512, 512
          %377 = vsyncadd [#allocation12], %s376
          %s378 = sshll.u32 [#allocation11], 4
          %s379 = int_to_ptr.vmem [resolvable:$true] %s378
          %384 = dma.hbm_to_vmem [thread:$0]  %s5, 512, %s379, [#allocation12], 128, 128, 8
        $region24: #{tpu_custom_call.1} parent=11 // pred_fallthru
          _
        // Predicated region
        $region25: #{tpu_custom_call.1} parent=11 // pred_check
          %p385 = pneg %p195
        $region26: #{tpu_custom_call.1} parent=11 // pred_check_branch
          %387 = sbr.rel (%p385) target = $region28
        $region27: #{tpu_custom_call.1} parent=11 // pred_region
          _
        $region28: #{tpu_custom_call.1} parent=11 // pred_fallthru
          _
        // Predicated region
        $region29: #{tpu_custom_call.1} parent=11 // pred_check
          %p388 = pneg %p216
        $region30: #{tpu_custom_call.1} parent=11 // pred_check_branch
          %390 = sbr.rel (%p388) target = $region32
        $region31: #{tpu_custom_call.1} parent=11 // pred_region
          _
        $region32: #{tpu_custom_call.1} parent=11 // pred_fallthru
          _
        // Predicated region
        $region33: #{tpu_custom_call.1} parent=11 // pred_check
          %p391 = pneg %p237
        $region34: #{tpu_custom_call.1} parent=11 // pred_check_branch
          %393 = sbr.rel (%p391) target = $region36
        $region35: #{tpu_custom_call.1} parent=11 // pred_region
          %s395 = ssub.s32 16, 16
          %396 = vsyncadd [#allocation12], %s395
          %s398 = sshll.u32 [#allocation13], 4
          %s399 = int_to_ptr.vmem [resolvable:$true] %s398
          %401 = dma.hbm_to_vmem [thread:$0]  %s8, 16, %s399, [#allocation12]
        $region36: #{tpu_custom_call.1} parent=11 // pred_fallthru
          _
        // Predicated region
        $region37: #{tpu_custom_call.1} parent=11 // pred_check
          %p402 = pneg %p258
        $region38: #{tpu_custom_call.1} parent=11 // pred_check_branch
          %404 = sbr.rel (%p402) target = $region40
        $region39: #{tpu_custom_call.1} parent=11 // pred_region
          _
        $region40: #{tpu_custom_call.1} parent=11 // pred_fallthru
          _
        // Predicated region
        $region41: #{tpu_custom_call.1} parent=11 // pred_check
          %p405 = pneg %p279
        $region42: #{tpu_custom_call.1} parent=11 // pred_check_branch
          %407 = sbr.rel (%p405) target = $region44
        $region43: #{tpu_custom_call.1} parent=11 // pred_region
          _
        $region44: #{tpu_custom_call.1} parent=11 // pred_fallthru
          _
      $region12: #{tpu_custom_call.1} parent=5 // pred_fallthru
        _
      %p408 = scmp.lt.s32.totalorder %s33, 2
      // Predicated region
      $region45: #{tpu_custom_call.1} parent=5 // pred_check
        %p409 = pneg %p408
      $region46: #{tpu_custom_call.1} parent=5 // pred_check_branch
        %411 = sbr.rel (%p409) target = $region48
      $region47: #{tpu_custom_call.1} parent=5 // pred_region
        // Predicated region
        $region49: #{tpu_custom_call.1} parent=47 // pred_check
          %p412 = pneg %p53
        $region50: #{tpu_custom_call.1} parent=47 // pred_check_branch
          %414 = sbr.rel (%p412) target = $region52
        $region51: #{tpu_custom_call.1} parent=47 // pred_region
          %s415 = sand.u32 %s43, 1
          %s416 = scalar_lea.sflag [#allocation3], %s415
          %s417 = sand.u32 %s43, 1
          %s418 = smul.addr %s417, 8
          %s419 = scalar_lea.vmem [#allocation2], %s418
          %s421 = ssub.s32 128, 128
          %422 = vsyncadd %s416, %s421
          %s423 = smul.addr %s33, 128
          %s424 = scalar_lea.hbm %s0, %s423
          %s426 = sshll.u32 %s419, 4
          %s427 = int_to_ptr.vmem [resolvable:$true] %s426
          %429 = dma.hbm_to_vmem [thread:$0]  %s424, 128, %s427, %s416
        $region52: #{tpu_custom_call.1} parent=47 // pred_fallthru
          _
        // Predicated region
        $region53: #{tpu_custom_call.1} parent=47 // pred_check
          %p430 = pneg %p79
        $region54: #{tpu_custom_call.1} parent=47 // pred_check_branch
          %432 = sbr.rel (%p430) target = $region56
        $region55: #{tpu_custom_call.1} parent=47 // pred_region
          %s433 = sand.u32 %s33, 1
          %s434 = scalar_lea.sflag [#allocation6], %s433
          %s435 = sand.u32 %s69, 1
          %s436 = smul.addr %s435, 8
          %s437 = scalar_lea.vmem [#allocation5], %s436
          %s439 = ssub.s32 128, 128
          %440 = vsyncadd %s434, %s439
          %s441 = smul.addr %s33, 128
          %s442 = scalar_lea.hbm %s1, %s441
          %s444 = sshll.u32 %s437, 4
          %s445 = int_to_ptr.vmem [resolvable:$true] %s444
          %447 = dma.hbm_to_vmem [thread:$0]  %s442, 128, %s445, %s434
        $region56: #{tpu_custom_call.1} parent=47 // pred_fallthru
          _
        // Predicated region
        $region57: #{tpu_custom_call.1} parent=47 // pred_check
          %p448 = pneg %p105
        $region58: #{tpu_custom_call.1} parent=47 // pred_check_branch
          %450 = sbr.rel (%p448) target = $region60
        $region59: #{tpu_custom_call.1} parent=47 // pred_region
          %s451 = sand.u32 %s33, 1
          %s452 = scalar_lea.sflag [#allocation6], %s451
          %s453 = sand.u32 %s95, 1
          %s454 = smul.addr %s453, 8
          %s455 = scalar_lea.vmem [#allocation7], %s454
          %s457 = ssub.s32 128, 128
          %458 = vsyncadd %s452, %s457
          %s459 = smul.addr %s33, 128
          %s460 = scalar_lea.hbm %s2, %s459
          %s462 = sshll.u32 %s455, 4
          %s463 = int_to_ptr.vmem [resolvable:$true] %s462
          %465 = dma.hbm_to_vmem [thread:$0]  %s460, 128, %s463, %s452
        $region60: #{tpu_custom_call.1} parent=47 // pred_fallthru
          _
      $region48: #{tpu_custom_call.1} parent=5 // pred_fallthru
        _
      %p466 = scmp.le.s32.totalorder 1, %s33
      %p467 = scmp.lt.s32.totalorder %s33, 3
      %p468 = pnand %p466, %p467
      %p469 = pneg %p468
      // Predicated region
      $region61: #{tpu_custom_call.1} parent=5 // pred_check
        _
      $region62: #{tpu_custom_call.1} parent=5 // pred_check_branch
        %471 = sbr.rel (%p468) target = $region64
      $region63: #{tpu_custom_call.1} parent=5 // pred_region
        %s472 = ssub.s32 %s33, 1
        %s473 = sand.u32 %s46, 1
        %s474 = scalar_lea.sflag [#allocation3], %s473
        %s475 = sand.u32 %s46, 1
        %s476 = smul.addr %s475, 8
        %s477 = scalar_lea.vmem [#allocation2], %s476
        // Predicated region
        $region65: #{tpu_custom_call.1} parent=63 // pred_check
          %p478 = pneg %p59
        $region66: #{tpu_custom_call.1} parent=63 // pred_check_branch
          %480 = sbr.rel (%p478) target = $region68
        $region67: #{tpu_custom_call.1} parent=63 // pred_region
          %481 = dma.done %s474, 128
        $region68: #{tpu_custom_call.1} parent=63 // pred_fallthru
          _
        %s482 = sand.u32 %s38, 1
        %s483 = scalar_lea.sflag [#allocation6], %s482
        %s484 = sand.u32 %s72, 1
        %s485 = smul.addr %s484, 8
        %s486 = scalar_lea.vmem [#allocation5], %s485
        // Predicated region
        $region69: #{tpu_custom_call.1} parent=63 // pred_check
          %p487 = pneg %p85
        $region70: #{tpu_custom_call.1} parent=63 // pred_check_branch
          %489 = sbr.rel (%p487) target = $region72
        $region71: #{tpu_custom_call.1} parent=63 // pred_region
          %490 = dma.done %s483, 128
        $region72: #{tpu_custom_call.1} parent=63 // pred_fallthru
          _
        %s491 = sand.u32 %s38, 1
        %s492 = scalar_lea.sflag [#allocation6], %s491
        %s493 = sand.u32 %s98, 1
        %s494 = smul.addr %s493, 8
        %s495 = scalar_lea.vmem [#allocation7], %s494
        // Predicated region
        $region73: #{tpu_custom_call.1} parent=63 // pred_check
          %p496 = pneg %p111
        $region74: #{tpu_custom_call.1} parent=63 // pred_check_branch
          %498 = sbr.rel (%p496) target = $region76
        $region75: #{tpu_custom_call.1} parent=63 // pred_region
          %499 = dma.done %s492, 128
        $region76: #{tpu_custom_call.1} parent=63 // pred_fallthru
          _
        // Predicated region
        $region77: #{tpu_custom_call.1} parent=63 // pred_check
          %p500 = pneg %p132
        $region78: #{tpu_custom_call.1} parent=63 // pred_check_branch
          %502 = sbr.rel (%p500) target = $region80
        $region79: #{tpu_custom_call.1} parent=63 // pred_region
          %503 = dma.done [#allocation9], 512
        $region80: #{tpu_custom_call.1} parent=63 // pred_fallthru
          _
        // Predicated region
        $region81: #{tpu_custom_call.1} parent=63 // pred_check
          %p504 = pneg %p153
        $region82: #{tpu_custom_call.1} parent=63 // pred_check_branch
          %506 = sbr.rel (%p504) target = $region84
        $region83: #{tpu_custom_call.1} parent=63 // pred_region
          %507 = dma.done [#allocation9], 512
        $region84: #{tpu_custom_call.1} parent=63 // pred_fallthru
          _
        // Predicated region
        $region85: #{tpu_custom_call.1} parent=63 // pred_check
          %p508 = pneg %p174
        $region86: #{tpu_custom_call.1} parent=63 // pred_check_branch
          %510 = sbr.rel (%p508) target = $region88
        $region87: #{tpu_custom_call.1} parent=63 // pred_region
          %511 = dma.done [#allocation12], 512
        $region88: #{tpu_custom_call.1} parent=63 // pred_fallthru
          _
        // Predicated region
        $region89: #{tpu_custom_call.1} parent=63 // pred_check
          %p512 = pneg %p237
        $region90: #{tpu_custom_call.1} parent=63 // pred_check_branch
          %514 = sbr.rel (%p512) target = $region92
        $region91: #{tpu_custom_call.1} parent=63 // pred_region
          %515 = dma.done [#allocation12], 16
        $region92: #{tpu_custom_call.1} parent=63 // pred_fallthru
          _
        %s516 = sand.u32 %s46, 1
        %s517 = scalar_lea.sflag [#allocation3], %s516
        %s518 = sand.u32 %s46, 1
        %s519 = smul.addr %s518, 8
        %s520 = scalar_lea.vmem [#allocation2], %s519
        %p521 = pneg %p59
        %p522 = pneg %p56
        %s523 = sand.u32 %s38, 1
        %s524 = scalar_lea.sflag [#allocation6], %s523
        %s525 = sand.u32 %s72, 1
        %s526 = smul.addr %s525, 8
        %s527 = scalar_lea.vmem [#allocation5], %s526
        %p528 = pneg %p85
        %p529 = pneg %p82
        %s530 = sand.u32 %s38, 1
        %s531 = scalar_lea.sflag [#allocation6], %s530
        %s532 = sand.u32 %s98, 1
        %s533 = smul.addr %s532, 8
        %s534 = scalar_lea.vmem [#allocation7], %s533
        %p535 = pneg %p111
        %p536 = pneg %p108
        %p537 = pneg %p132
        %p538 = pneg %p129
        %p539 = pneg %p153
        %p540 = pneg %p150
        %p541 = pneg %p174
        %p542 = pneg %p171
        %p543 = pneg %p195
        %p544 = pneg %p192
        %p545 = pneg %p216
        %p546 = pneg %p213
        %p547 = pneg %p237
        %p548 = pneg %p234
        %p549 = pneg %p258
        %p550 = pneg %p255
        %p551 = pneg %p279
        %p552 = pneg %p276
        %p553 = pneg %p305
        %p554 = pneg %p302
        %s555 = sand.u32 %s292, 1
        %s556 = scalar_lea.sflag [#allocation4], %s555
        %s557 = sand.u32 %s292, 1
        %s558 = smul.addr %s557, 8
        %s559 = scalar_lea.vmem [#allocation14], %s558
        %p560 = pneg %p331
        %p561 = pneg %p328
        %s562 = sand.u32 %s318, 1
        %s563 = scalar_lea.sflag [#allocation16], %s562
        %s564 = sand.u32 %s318, 1
        %s565 = smul.addr %s564, 32
        %s566 = scalar_lea.vmem [#allocation15], %s565
        %v567 = vld [vmem:[%s477] sm:$0xff]
        %v568 = vld [vmem:[#allocation8] sm:$0xff]
        %v569 = vld [vmem:[#allocation8 + $0x8] sm:$0xff]
        %v570 = vld [vmem:[#allocation8 + $0x10] sm:$0xff]
        %v571 = vld [vmem:[#allocation8 + $0x18] sm:$0xff]
        %v572 = vld [vmem:[%s6] sm:$0x1]
        %v574 = vlaneseq
        %v575 = vshrl.u32 %v574, 7
        %v576 = vsub.s32 0, %v575
        %v577 = vrot.slane %v572, %v576
        %vm579 = vcmask 261120
        %v581 = vsel %vm579, %v567, 0
        %583 = vmatprep.subr.mxu0 0.0
        %584 = vmatpush1.msra.mxu0 %v568
        %585 = vmatprep.subr.mxu0 0.0
        %586 = vmatpush1.msra.mxu0 %v569
        %587 = vmatprep.subr.mxu0 0.0
        %588 = vmatpush1.msra.mxu0 %v570
        %589 = vmatprep.subr.mxu0 0.0
        %590 = vmatpush1.msra.mxu0 %v571
        %591 = vmatprep.subr.mxu0 0.0
        %592 = vmatpush1.msra.mxu0 0.0
        %593 = vmatprep.subr.mxu0 0.0
        %594 = vmatpush1.msra.mxu0 0.0
        %595 = vmatprep.subr.mxu0 0.0
        %596 = vmatpush1.msra.mxu0 0.0
        %597 = vmatprep.subr.mxu0 0.0
        %598 = vmatpush1.msra.mxu0 0.0
        %599 = vmatprep.subr.mxu0 0.0
        %600 = vmatpush1.msra.mxu0 0.0
        %601 = vmatprep.subr.mxu0 0.0
        %602 = vmatpush1.msra.mxu0 0.0
        %603 = vmatprep.subr.mxu0 0.0
        %604 = vmatpush1.msra.mxu0 0.0
        %605 = vmatprep.subr.mxu0 0.0
        %606 = vmatpush1.msra.mxu0 0.0
        %607 = vmatprep.subr.mxu0 0.0
        %608 = vmatpush1.msra.mxu0 0.0
        %609 = vmatprep.subr.mxu0 0.0
        %610 = vmatpush1.msra.mxu0 0.0
        %611 = vmatprep.subr.mxu0 0.0
        %612 = vmatpush1.msra.mxu0 0.0
        %613 = vmatprep.subr.mxu0 0.0
        %614 = vmatpush1.msra.mxu0 0.0
        %615 = vmatprep.subr.mxu0 0.0
        %616 = vmatpush1.msra.mxu0 0.0
        %617 = vmatprep.subr.mxu0 0.0
        %618 = vmatpush1.msra.mxu0 0.0
        %619 = vmatprep.subr.mxu0 0.0
        %620 = vmatpush1.msra.mxu0 0.0
        %621 = vmatprep.subr.mxu0 0.0
        %622 = vmatpush1.msra.mxu0 0.0
        %623 = vmatprep.subr.mxu0 0.0
        %624 = vmatpush1.msra.mxu0 0.0
        %625 = vmatprep.subr.mxu0 0.0
        %626 = vmatpush1.msra.mxu0 0.0
        %627 = vmatprep.subr.mxu0 0.0
        %628 = vmatpush1.msra.mxu0 0.0
        %629 = vmatprep.subr.mxu0 0.0
        %630 = vmatpush1.msra.mxu0 0.0
        %631 = vmatprep.subr.mxu0 0.0
        %632 = vmatpush1.msra.mxu0 0.0
        %633 = vmatprep.subr.mxu0 0.0
        %634 = vmatpush1.msra.mxu0 0.0
        %635 = vmatprep.subr.mxu0 0.0
        %636 = vmatpush1.msra.mxu0 0.0
        %637 = vmatprep.subr.mxu0 0.0
        %638 = vmatpush1.msra.mxu0 0.0
        %639 = vmatprep.subr.mxu0 0.0
        %640 = vmatpush1.msra.mxu0 0.0
        %641 = vmatprep.subr.mxu0 0.0
        %642 = vmatpush1.msra.mxu0 0.0
        %643 = vmatprep.subr.mxu0 0.0
        %644 = vmatpush1.msra.mxu0 0.0
        %645 = vmatprep.subr.mxu0 0.0
        %646 = vmatpush1.msra.mxu0 0.0
        %647 = vmatprep.mubr.f32.mxu0 0.0
        %648 = vmatmul.mubr.f32.gmra.mrb[0].mxu0 %v581
        %v649 = vpop.f32.mrb[0].mxu0
        %v650 = vadd.f32 %v577, %v649
        %v651 = vpop.f32.mrb[0].mxu0
        %652 = vdwg.mxu0
        %v653 = vld [vmem:[%s486] sm:$0xff]
        %v654 = vld [vmem:[#allocation10] sm:$0xff]
        %v655 = vld [vmem:[#allocation10 + $0x8] sm:$0xff]
        %v656 = vld [vmem:[#allocation10 + $0x10] sm:$0xff]
        %v657 = vld [vmem:[#allocation10 + $0x18] sm:$0xff]
        %v658 = vld [vmem:[%s7] sm:$0x1]
        %v660 = vlaneseq
        %v661 = vshrl.u32 %v660, 7
        %v662 = vsub.s32 0, %v661
        %v663 = vrot.slane %v658, %v662
        %v666 = vsel %vm579, %v653, 0
        %668 = vmatprep.subr.mxu0 0.0
        %669 = vmatpush1.msra.mxu0 %v654
        %670 = vmatprep.subr.mxu0 0.0
        %671 = vmatpush1.msra.mxu0 %v655
        %672 = vmatprep.subr.mxu0 0.0
        %673 = vmatpush1.msra.mxu0 %v656
        %674 = vmatprep.subr.mxu0 0.0
        %675 = vmatpush1.msra.mxu0 %v657
        %676 = vmatprep.subr.mxu0 0.0
        %677 = vmatpush1.msra.mxu0 0.0
        %678 = vmatprep.subr.mxu0 0.0
        %679 = vmatpush1.msra.mxu0 0.0
        %680 = vmatprep.subr.mxu0 0.0
        %681 = vmatpush1.msra.mxu0 0.0
        %682 = vmatprep.subr.mxu0 0.0
        %683 = vmatpush1.msra.mxu0 0.0
        %684 = vmatprep.subr.mxu0 0.0
        %685 = vmatpush1.msra.mxu0 0.0
        %686 = vmatprep.subr.mxu0 0.0
        %687 = vmatpush1.msra.mxu0 0.0
        %688 = vmatprep.subr.mxu0 0.0
        %689 = vmatpush1.msra.mxu0 0.0
        %690 = vmatprep.subr.mxu0 0.0
        %691 = vmatpush1.msra.mxu0 0.0
        %692 = vmatprep.subr.mxu0 0.0
        %693 = vmatpush1.msra.mxu0 0.0
        %694 = vmatprep.subr.mxu0 0.0
        %695 = vmatpush1.msra.mxu0 0.0
        %696 = vmatprep.subr.mxu0 0.0
        %697 = vmatpush1.msra.mxu0 0.0
        %698 = vmatprep.subr.mxu0 0.0
        %699 = vmatpush1.msra.mxu0 0.0
        %700 = vmatprep.subr.mxu0 0.0
        %701 = vmatpush1.msra.mxu0 0.0
        %702 = vmatprep.subr.mxu0 0.0
        %703 = vmatpush1.msra.mxu0 0.0
        %704 = vmatprep.subr.mxu0 0.0
        %705 = vmatpush1.msra.mxu0 0.0
        %706 = vmatprep.subr.mxu0 0.0
        %707 = vmatpush1.msra.mxu0 0.0
        %708 = vmatprep.subr.mxu0 0.0
        %709 = vmatpush1.msra.mxu0 0.0
        %710 = vmatprep.subr.mxu0 0.0
        %711 = vmatpush1.msra.mxu0 0.0
        %712 = vmatprep.subr.mxu0 0.0
        %713 = vmatpush1.msra.mxu0 0.0
        %714 = vmatprep.subr.mxu0 0.0
        %715 = vmatpush1.msra.mxu0 0.0
        %716 = vmatprep.subr.mxu0 0.0
        %717 = vmatpush1.msra.mxu0 0.0
        %718 = vmatprep.subr.mxu0 0.0
        %719 = vmatpush1.msra.mxu0 0.0
        %720 = vmatprep.subr.mxu0 0.0
        %721 = vmatpush1.msra.mxu0 0.0
        %722 = vmatprep.subr.mxu0 0.0
        %723 = vmatpush1.msra.mxu0 0.0
        %724 = vmatprep.subr.mxu0 0.0
        %725 = vmatpush1.msra.mxu0 0.0
        %726 = vmatprep.subr.mxu0 0.0
        %727 = vmatpush1.msra.mxu0 0.0
        %728 = vmatprep.subr.mxu0 0.0
        %729 = vmatpush1.msra.mxu0 0.0
        %730 = vmatprep.subr.mxu0 0.0
        %731 = vmatpush1.msra.mxu0 0.0
        %732 = vmatprep.mubr.f32.mxu0 0.0
        %733 = vmatmul.mubr.f32.gmra.mrb[0].mxu0 %v666
        %v734 = vpop.f32.mrb[0].mxu0
        %v735 = vadd.f32 %v663, %v734
        %v736 = vpop.f32.mrb[0].mxu0
        %737 = vdwg.mxu0
        %v738 = vld [vmem:[%s495] sm:$0xff]
        %v739 = vld [vmem:[#allocation11] sm:$0xff]
        %v740 = vld [vmem:[#allocation11 + $0x8] sm:$0xff]
        %v741 = vld [vmem:[#allocation11 + $0x10] sm:$0xff]
        %v742 = vld [vmem:[#allocation11 + $0x18] sm:$0xff]
        %v743 = vld [vmem:[#allocation13] sm:$0x1]
        %v745 = vlaneseq
        %v746 = vshrl.u32 %v745, 7
        %v747 = vsub.s32 0, %v746
        %v748 = vrot.slane %v743, %v747
        %v751 = vsel %vm579, %v738, 0
        %753 = vmatprep.subr.mxu0 0.0
        %754 = vmatpush1.msra.mxu0 %v739
        %755 = vmatprep.subr.mxu0 0.0
        %756 = vmatpush1.msra.mxu0 %v740
        %757 = vmatprep.subr.mxu0 0.0
        %758 = vmatpush1.msra.mxu0 %v741
        %759 = vmatprep.subr.mxu0 0.0
        %760 = vmatpush1.msra.mxu0 %v742
        %761 = vmatprep.subr.mxu0 0.0
        %762 = vmatpush1.msra.mxu0 0.0
        %763 = vmatprep.subr.mxu0 0.0
        %764 = vmatpush1.msra.mxu0 0.0
        %765 = vmatprep.subr.mxu0 0.0
        %766 = vmatpush1.msra.mxu0 0.0
        %767 = vmatprep.subr.mxu0 0.0
        %768 = vmatpush1.msra.mxu0 0.0
        %769 = vmatprep.subr.mxu0 0.0
        %770 = vmatpush1.msra.mxu0 0.0
        %771 = vmatprep.subr.mxu0 0.0
        %772 = vmatpush1.msra.mxu0 0.0
        %773 = vmatprep.subr.mxu0 0.0
        %774 = vmatpush1.msra.mxu0 0.0
        %775 = vmatprep.subr.mxu0 0.0
        %776 = vmatpush1.msra.mxu0 0.0
        %777 = vmatprep.subr.mxu0 0.0
        %778 = vmatpush1.msra.mxu0 0.0
        %779 = vmatprep.subr.mxu0 0.0
        %780 = vmatpush1.msra.mxu0 0.0
        %781 = vmatprep.subr.mxu0 0.0
        %782 = vmatpush1.msra.mxu0 0.0
        %783 = vmatprep.subr.mxu0 0.0
        %784 = vmatpush1.msra.mxu0 0.0
        %785 = vmatprep.subr.mxu0 0.0
        %786 = vmatpush1.msra.mxu0 0.0
        %787 = vmatprep.subr.mxu0 0.0
        %788 = vmatpush1.msra.mxu0 0.0
        %789 = vmatprep.subr.mxu0 0.0
        %790 = vmatpush1.msra.mxu0 0.0
        %791 = vmatprep.subr.mxu0 0.0
        %792 = vmatpush1.msra.mxu0 0.0
        %793 = vmatprep.subr.mxu0 0.0
        %794 = vmatpush1.msra.mxu0 0.0
        %795 = vmatprep.subr.mxu0 0.0
        %796 = vmatpush1.msra.mxu0 0.0
        %797 = vmatprep.subr.mxu0 0.0
        %798 = vmatpush1.msra.mxu0 0.0
        %799 = vmatprep.subr.mxu0 0.0
        %800 = vmatpush1.msra.mxu0 0.0
        %801 = vmatprep.subr.mxu0 0.0
        %802 = vmatpush1.msra.mxu0 0.0
        %803 = vmatprep.subr.mxu0 0.0
        %804 = vmatpush1.msra.mxu0 0.0
        %805 = vmatprep.subr.mxu0 0.0
        %806 = vmatpush1.msra.mxu0 0.0
        %807 = vmatprep.subr.mxu0 0.0
        %808 = vmatpush1.msra.mxu0 0.0
        %809 = vmatprep.subr.mxu0 0.0
        %810 = vmatpush1.msra.mxu0 0.0
        %811 = vmatprep.subr.mxu0 0.0
        %812 = vmatpush1.msra.mxu0 0.0
        %813 = vmatprep.subr.mxu0 0.0
        %814 = vmatpush1.msra.mxu0 0.0
        %815 = vmatprep.subr.mxu0 0.0
        %816 = vmatpush1.msra.mxu0 0.0
        %817 = vmatprep.mubr.f32.mxu0 0.0
        %818 = vmatmul.mubr.f32.gmra.mrb[0].mxu0 %v751
        %v819 = vpop.f32.mrb[0].mxu0
        %v820 = vadd.f32 %v748, %v819
        %v821 = vpop.f32.mrb[0].mxu0
        %822 = vdwg.mxu0
        %vm823 = vcmask 64512
        %v825 = vsel %vm823, %v650, 0
        %v828 = vsel %vm823, %v735, 0
        %830 = vmatprep.subr.mxu0 0.0
        %831 = vmatpush1.xpose.msra.mxu0 %v828
        %832 = vmatprep.subr.mxu0 0.0
        %833 = vmatpush1.xpose.msra.mxu0 0.0
        %834 = vmatprep.subr.mxu0 0.0
        %835 = vmatpush1.xpose.msra.mxu0 0.0
        %836 = vmatprep.subr.mxu0 0.0
        %837 = vmatpush1.xpose.msra.mxu0 0.0
        %838 = vmatprep.subr.mxu0 0.0
        %839 = vmatpush1.xpose.msra.mxu0 0.0
        %840 = vmatprep.subr.mxu0 0.0
        %841 = vmatpush1.xpose.msra.mxu0 0.0
        %842 = vmatprep.subr.mxu0 0.0
        %843 = vmatpush1.xpose.msra.mxu0 0.0
        %844 = vmatprep.subr.mxu0 0.0
        %845 = vmatpush1.xpose.msra.mxu0 0.0
        %846 = vmatprep.subr.mxu0 0.0
        %847 = vmatpush1.xpose.msra.mxu0 0.0
        %848 = vmatprep.subr.mxu0 0.0
        %849 = vmatpush1.xpose.msra.mxu0 0.0
        %850 = vmatprep.subr.mxu0 0.0
        %851 = vmatpush1.xpose.msra.mxu0 0.0
        %852 = vmatprep.subr.mxu0 0.0
        %853 = vmatpush1.xpose.msra.mxu0 0.0
        %854 = vmatprep.subr.mxu0 0.0
        %855 = vmatpush1.xpose.msra.mxu0 0.0
        %856 = vmatprep.subr.mxu0 0.0
        %857 = vmatpush1.xpose.msra.mxu0 0.0
        %858 = vmatprep.subr.mxu0 0.0
        %859 = vmatpush1.xpose.msra.mxu0 0.0
        %860 = vmatprep.subr.mxu0 0.0
        %861 = vmatpush1.xpose.msra.mxu0 0.0
        %862 = vmatprep.subr.mxu0 0.0
        %863 = vmatpush1.xpose.msra.mxu0 0.0
        %864 = vmatprep.subr.mxu0 0.0
        %865 = vmatpush1.xpose.msra.mxu0 0.0
        %866 = vmatprep.subr.mxu0 0.0
        %867 = vmatpush1.xpose.msra.mxu0 0.0
        %868 = vmatprep.subr.mxu0 0.0
        %869 = vmatpush1.xpose.msra.mxu0 0.0
        %870 = vmatprep.subr.mxu0 0.0
        %871 = vmatpush1.xpose.msra.mxu0 0.0
        %872 = vmatprep.subr.mxu0 0.0
        %873 = vmatpush1.xpose.msra.mxu0 0.0
        %874 = vmatprep.subr.mxu0 0.0
        %875 = vmatpush1.xpose.msra.mxu0 0.0
        %876 = vmatprep.subr.mxu0 0.0
        %877 = vmatpush1.xpose.msra.mxu0 0.0
        %878 = vmatprep.subr.mxu0 0.0
        %879 = vmatpush1.xpose.msra.mxu0 0.0
        %880 = vmatprep.subr.mxu0 0.0
        %881 = vmatpush1.xpose.msra.mxu0 0.0
        %882 = vmatprep.subr.mxu0 0.0
        %883 = vmatpush1.xpose.msra.mxu0 0.0
        %884 = vmatprep.subr.mxu0 0.0
        %885 = vmatpush1.xpose.msra.mxu0 0.0
        %886 = vmatprep.subr.mxu0 0.0
        %887 = vmatpush1.xpose.msra.mxu0 0.0
        %888 = vmatprep.subr.mxu0 0.0
        %889 = vmatpush1.xpose.msra.mxu0 0.0
        %890 = vmatprep.subr.mxu0 0.0
        %891 = vmatpush1.xpose.msra.mxu0 0.0
        %892 = vmatprep.subr.mxu0 0.0
        %893 = vmatpush1.xpose.msra.mxu0 0.0
        %894 = vmatprep.mubr.f32.mxu0 0.0
        %895 = vmatmul.mubr.f32.gmra.mrb[0].mxu0 %v825
        %v896 = vpop.f32.mrb[0].mxu0
        %v897 = vadd.f32 0.0, %v896
        %v898 = vpop.f32.mrb[0].mxu0
        %899 = vdwg.mxu0
        %v900 = vsel %vm823, %v897, -inf
        %901 = vmax.xlane.f32.xlu0 %v900
        %v902 = vpop.xlane.xlu0 %901
        %v903 = vsub.f32 %v897, %v902
        %v904 = vmul.f32 %v903, 1.442695
        %v905 = vpow.pop %v904
        %v906 = vsel %vm823, %v905, 0.0
        %907 = vadd.xlane.f32.xlu0 %v906
        %v908 = vpop.xlane.xlu0 %907
        %v909 = vrcp.pop %v908
        %v910 = vmul.f32 %v905, %v909
        %911 = vst.msk [vmem:[%s566] sm:$0xff] %vm823, %v910
        %v913 = vsel %vm823, %v910, 0
        %915 = vmatprep.subr.mxu0 0.0
        %916 = vmatpush1.msra.mxu0 %v820
        %917 = vmatprep.subr.mxu0 0.0
        %918 = vmatpush1.msra.mxu0 0.0
        %919 = vmatprep.subr.mxu0 0.0
        %920 = vmatpush1.msra.mxu0 0.0
        %921 = vmatprep.subr.mxu0 0.0
        %922 = vmatpush1.msra.mxu0 0.0
        %923 = vmatprep.subr.mxu0 0.0
        %924 = vmatpush1.msra.mxu0 0.0
        %925 = vmatprep.subr.mxu0 0.0
        %926 = vmatpush1.msra.mxu0 0.0
        %927 = vmatprep.subr.mxu0 0.0
        %928 = vmatpush1.msra.mxu0 0.0
        %929 = vmatprep.subr.mxu0 0.0
        %930 = vmatpush1.msra.mxu0 0.0
        %931 = vmatprep.subr.mxu0 0.0
        %932 = vmatpush1.msra.mxu0 0.0
        %933 = vmatprep.subr.mxu0 0.0
        %934 = vmatpush1.msra.mxu0 0.0
        %935 = vmatprep.subr.mxu0 0.0
        %936 = vmatpush1.msra.mxu0 0.0
        %937 = vmatprep.subr.mxu0 0.0
        %938 = vmatpush1.msra.mxu0 0.0
        %939 = vmatprep.subr.mxu0 0.0
        %940 = vmatpush1.msra.mxu0 0.0
        %941 = vmatprep.subr.mxu0 0.0
        %942 = vmatpush1.msra.mxu0 0.0
        %943 = vmatprep.subr.mxu0 0.0
        %944 = vmatpush1.msra.mxu0 0.0
        %945 = vmatprep.subr.mxu0 0.0
        %946 = vmatpush1.msra.mxu0 0.0
        %947 = vmatprep.subr.mxu0 0.0
        %948 = vmatpush1.msra.mxu0 0.0
        %949 = vmatprep.subr.mxu0 0.0
        %950 = vmatpush1.msra.mxu0 0.0
        %951 = vmatprep.subr.mxu0 0.0
        %952 = vmatpush1.msra.mxu0 0.0
        %953 = vmatprep.subr.mxu0 0.0
        %954 = vmatpush1.msra.mxu0 0.0
        %955 = vmatprep.subr.mxu0 0.0
        %956 = vmatpush1.msra.mxu0 0.0
        %957 = vmatprep.subr.mxu0 0.0
        %958 = vmatpush1.msra.mxu0 0.0
        %959 = vmatprep.subr.mxu0 0.0
        %960 = vmatpush1.msra.mxu0 0.0
        %961 = vmatprep.subr.mxu0 0.0
        %962 = vmatpush1.msra.mxu0 0.0
        %963 = vmatprep.subr.mxu0 0.0
        %964 = vmatpush1.msra.mxu0 0.0
        %965 = vmatprep.subr.mxu0 0.0
        %966 = vmatpush1.msra.mxu0 0.0
        %967 = vmatprep.subr.mxu0 0.0
        %968 = vmatpush1.msra.mxu0 0.0
        %969 = vmatprep.subr.mxu0 0.0
        %970 = vmatpush1.msra.mxu0 0.0
        %971 = vmatprep.subr.mxu0 0.0
        %972 = vmatpush1.msra.mxu0 0.0
        %973 = vmatprep.subr.mxu0 0.0
        %974 = vmatpush1.msra.mxu0 0.0
        %975 = vmatprep.subr.mxu0 0.0
        %976 = vmatpush1.msra.mxu0 0.0
        %977 = vmatprep.subr.mxu0 0.0
        %978 = vmatpush1.msra.mxu0 0.0
        %979 = vmatprep.mubr.f32.mxu0 0.0
        %980 = vmatmul.mubr.f32.gmra.mrb[0].mxu0 %v913
        %v981 = vpop.f32.mrb[0].mxu0
        %v982 = vadd.f32 0.0, %v981
        %v983 = vpop.f32.mrb[0].mxu0
        %984 = vdwg.mxu0
        %985 = vrot.lane.b32.xlu0 %v650, 120
        %v986 = vpop.permute.xlu0 %985
        %987 = vrot.lane.b32.xlu0 %v735, 120
        %v988 = vpop.permute.xlu0 %987
        %v989 = vsel %vm823, %v986, 0
        %v991 = vsel %vm823, %v988, 0
        %993 = vmatprep.subr.mxu0 0.0
        %994 = vmatpush1.xpose.msra.mxu0 %v991
        %995 = vmatprep.subr.mxu0 0.0
        %996 = vmatpush1.xpose.msra.mxu0 0.0
        %997 = vmatprep.subr.mxu0 0.0
        %998 = vmatpush1.xpose.msra.mxu0 0.0
        %999 = vmatprep.subr.mxu0 0.0
        %1000 = vmatpush1.xpose.msra.mxu0 0.0
        %1001 = vmatprep.subr.mxu0 0.0
        %1002 = vmatpush1.xpose.msra.mxu0 0.0
        %1003 = vmatprep.subr.mxu0 0.0
        %1004 = vmatpush1.xpose.msra.mxu0 0.0
        %1005 = vmatprep.subr.mxu0 0.0
        %1006 = vmatpush1.xpose.msra.mxu0 0.0
        %1007 = vmatprep.subr.mxu0 0.0
        %1008 = vmatpush1.xpose.msra.mxu0 0.0
        %1009 = vmatprep.subr.mxu0 0.0
        %1010 = vmatpush1.xpose.msra.mxu0 0.0
        %1011 = vmatprep.subr.mxu0 0.0
        %1012 = vmatpush1.xpose.msra.mxu0 0.0
        %1013 = vmatprep.subr.mxu0 0.0
        %1014 = vmatpush1.xpose.msra.mxu0 0.0
        %1015 = vmatprep.subr.mxu0 0.0
        %1016 = vmatpush1.xpose.msra.mxu0 0.0
        %1017 = vmatprep.subr.mxu0 0.0
        %1018 = vmatpush1.xpose.msra.mxu0 0.0
        %1019 = vmatprep.subr.mxu0 0.0
        %1020 = vmatpush1.xpose.msra.mxu0 0.0
        %1021 = vmatprep.subr.mxu0 0.0
        %1022 = vmatpush1.xpose.msra.mxu0 0.0
        %1023 = vmatprep.subr.mxu0 0.0
        %1024 = vmatpush1.xpose.msra.mxu0 0.0
        %1025 = vmatprep.subr.mxu0 0.0
        %1026 = vmatpush1.xpose.msra.mxu0 0.0
        %1027 = vmatprep.subr.mxu0 0.0
        %1028 = vmatpush1.xpose.msra.mxu0 0.0
        %1029 = vmatprep.subr.mxu0 0.0
        %1030 = vmatpush1.xpose.msra.mxu0 0.0
        %1031 = vmatprep.subr.mxu0 0.0
        %1032 = vmatpush1.xpose.msra.mxu0 0.0
        %1033 = vmatprep.subr.mxu0 0.0
        %1034 = vmatpush1.xpose.msra.mxu0 0.0
        %1035 = vmatprep.subr.mxu0 0.0
        %1036 = vmatpush1.xpose.msra.mxu0 0.0
        %1037 = vmatprep.subr.mxu0 0.0
        %1038 = vmatpush1.xpose.msra.mxu0 0.0
        %1039 = vmatprep.subr.mxu0 0.0
        %1040 = vmatpush1.xpose.msra.mxu0 0.0
        %1041 = vmatprep.subr.mxu0 0.0
        %1042 = vmatpush1.xpose.msra.mxu0 0.0
        %1043 = vmatprep.subr.mxu0 0.0
        %1044 = vmatpush1.xpose.msra.mxu0 0.0
        %1045 = vmatprep.subr.mxu0 0.0
        %1046 = vmatpush1.xpose.msra.mxu0 0.0
        %1047 = vmatprep.subr.mxu0 0.0
        %1048 = vmatpush1.xpose.msra.mxu0 0.0
        %1049 = vmatprep.subr.mxu0 0.0
        %1050 = vmatpush1.xpose.msra.mxu0 0.0
        %1051 = vmatprep.subr.mxu0 0.0
        %1052 = vmatpush1.xpose.msra.mxu0 0.0
        %1053 = vmatprep.subr.mxu0 0.0
        %1054 = vmatpush1.xpose.msra.mxu0 0.0
        %1055 = vmatprep.subr.mxu0 0.0
        %1056 = vmatpush1.xpose.msra.mxu0 0.0
        %1057 = vmatprep.mubr.f32.mxu0 0.0
        %1058 = vmatmul.mubr.f32.gmra.mrb[0].mxu0 %v989
        %v1059 = vpop.f32.mrb[0].mxu0
        %v1060 = vadd.f32 0.0, %v1059
        %v1061 = vpop.f32.mrb[0].mxu0
        %1062 = vdwg.mxu0
        %v1063 = vsel %vm823, %v1060, -inf
        %1064 = vmax.xlane.f32.xlu0 %v1063
        %v1065 = vpop.xlane.xlu0 %1064
        %v1066 = vsub.f32 %v1060, %v1065
        %v1067 = vmul.f32 %v1066, 1.442695
        %v1068 = vpow.pop %v1067
        %v1069 = vsel %vm823, %v1068, 0.0
        %1070 = vadd.xlane.f32.xlu0 %v1069
        %v1071 = vpop.xlane.xlu0 %1070
        %v1072 = vrcp.pop %v1071
        %v1073 = vmul.f32 %v1068, %v1072
        %s1074 = scalar_lea.vmem %s566, 8 [#allocation15]
        %1075 = vst.msk [vmem:[%s1074] sm:$0xff] %vm823, %v1073
        %1077 = vrot.lane.b32.xlu0 %v820, 120
        %v1078 = vpop.permute.xlu0 %1077
        %v1081 = vsel %vm823, %v1073, 0
        %1083 = vmatprep.subr.mxu0 0.0
        %1084 = vmatpush1.msra.mxu0 %v1078
        %1085 = vmatprep.subr.mxu0 0.0
        %1086 = vmatpush1.msra.mxu0 0.0
        %1087 = vmatprep.subr.mxu0 0.0
        %1088 = vmatpush1.msra.mxu0 0.0
        %1089 = vmatprep.subr.mxu0 0.0
        %1090 = vmatpush1.msra.mxu0 0.0
        %1091 = vmatprep.subr.mxu0 0.0
        %1092 = vmatpush1.msra.mxu0 0.0
        %1093 = vmatprep.subr.mxu0 0.0
        %1094 = vmatpush1.msra.mxu0 0.0
        %1095 = vmatprep.subr.mxu0 0.0
        %1096 = vmatpush1.msra.mxu0 0.0
        %1097 = vmatprep.subr.mxu0 0.0
        %1098 = vmatpush1.msra.mxu0 0.0
        %1099 = vmatprep.subr.mxu0 0.0
        %1100 = vmatpush1.msra.mxu0 0.0
        %1101 = vmatprep.subr.mxu0 0.0
        %1102 = vmatpush1.msra.mxu0 0.0
        %1103 = vmatprep.subr.mxu0 0.0
        %1104 = vmatpush1.msra.mxu0 0.0
        %1105 = vmatprep.subr.mxu0 0.0
        %1106 = vmatpush1.msra.mxu0 0.0
        %1107 = vmatprep.subr.mxu0 0.0
        %1108 = vmatpush1.msra.mxu0 0.0
        %1109 = vmatprep.subr.mxu0 0.0
        %1110 = vmatpush1.msra.mxu0 0.0
        %1111 = vmatprep.subr.mxu0 0.0
        %1112 = vmatpush1.msra.mxu0 0.0
        %1113 = vmatprep.subr.mxu0 0.0
        %1114 = vmatpush1.msra.mxu0 0.0
        %1115 = vmatprep.subr.mxu0 0.0
        %1116 = vmatpush1.msra.mxu0 0.0
        %1117 = vmatprep.subr.mxu0 0.0
        %1118 = vmatpush1.msra.mxu0 0.0
        %1119 = vmatprep.subr.mxu0 0.0
        %1120 = vmatpush1.msra.mxu0 0.0
        %1121 = vmatprep.subr.mxu0 0.0
        %1122 = vmatpush1.msra.mxu0 0.0
        %1123 = vmatprep.subr.mxu0 0.0
        %1124 = vmatpush1.msra.mxu0 0.0
        %1125 = vmatprep.subr.mxu0 0.0
        %1126 = vmatpush1.msra.mxu0 0.0
        %1127 = vmatprep.subr.mxu0 0.0
        %1128 = vmatpush1.msra.mxu0 0.0
        %1129 = vmatprep.subr.mxu0 0.0
        %1130 = vmatpush1.msra.mxu0 0.0
        %1131 = vmatprep.subr.mxu0 0.0
        %1132 = vmatpush1.msra.mxu0 0.0
        %1133 = vmatprep.subr.mxu0 0.0
        %1134 = vmatpush1.msra.mxu0 0.0
        %1135 = vmatprep.subr.mxu0 0.0
        %1136 = vmatpush1.msra.mxu0 0.0
        %1137 = vmatprep.subr.mxu0 0.0
        %1138 = vmatpush1.msra.mxu0 0.0
        %1139 = vmatprep.subr.mxu0 0.0
        %1140 = vmatpush1.msra.mxu0 0.0
        %1141 = vmatprep.subr.mxu0 0.0
        %1142 = vmatpush1.msra.mxu0 0.0
        %1143 = vmatprep.subr.mxu0 0.0
        %1144 = vmatpush1.msra.mxu0 0.0
        %1145 = vmatprep.subr.mxu0 0.0
        %1146 = vmatpush1.msra.mxu0 0.0
        %1147 = vmatprep.mubr.f32.mxu0 0.0
        %1148 = vmatmul.mubr.f32.gmra.mrb[0].mxu0 %v1081
        %v1149 = vpop.f32.mrb[0].mxu0
        %v1150 = vadd.f32 0.0, %v1149
        %v1151 = vpop.f32.mrb[0].mxu0
        %1152 = vdwg.mxu0
        %1153 = vrot.lane.b32.xlu0 %v650, 112
        %v1154 = vpop.permute.xlu0 %1153
        %1155 = vrot.lane.b32.xlu0 %v735, 112
        %v1156 = vpop.permute.xlu0 %1155
        %v1157 = vsel %vm823, %v1154, 0
        %v1159 = vsel %vm823, %v1156, 0
        %1161 = vmatprep.subr.mxu0 0.0
        %1162 = vmatpush1.xpose.msra.mxu0 %v1159
        %1163 = vmatprep.subr.mxu0 0.0
        %1164 = vmatpush1.xpose.msra.mxu0 0.0
        %1165 = vmatprep.subr.mxu0 0.0
        %1166 = vmatpush1.xpose.msra.mxu0 0.0
        %1167 = vmatprep.subr.mxu0 0.0
        %1168 = vmatpush1.xpose.msra.mxu0 0.0
        %1169 = vmatprep.subr.mxu0 0.0
        %1170 = vmatpush1.xpose.msra.mxu0 0.0
        %1171 = vmatprep.subr.mxu0 0.0
        %1172 = vmatpush1.xpose.msra.mxu0 0.0
        %1173 = vmatprep.subr.mxu0 0.0
        %1174 = vmatpush1.xpose.msra.mxu0 0.0
        %1175 = vmatprep.subr.mxu0 0.0
        %1176 = vmatpush1.xpose.msra.mxu0 0.0
        %1177 = vmatprep.subr.mxu0 0.0
        %1178 = vmatpush1.xpose.msra.mxu0 0.0
        %1179 = vmatprep.subr.mxu0 0.0
        %1180 = vmatpush1.xpose.msra.mxu0 0.0
        %1181 = vmatprep.subr.mxu0 0.0
        %1182 = vmatpush1.xpose.msra.mxu0 0.0
        %1183 = vmatprep.subr.mxu0 0.0
        %1184 = vmatpush1.xpose.msra.mxu0 0.0
        %1185 = vmatprep.subr.mxu0 0.0
        %1186 = vmatpush1.xpose.msra.mxu0 0.0
        %1187 = vmatprep.subr.mxu0 0.0
        %1188 = vmatpush1.xpose.msra.mxu0 0.0
        %1189 = vmatprep.subr.mxu0 0.0
        %1190 = vmatpush1.xpose.msra.mxu0 0.0
        %1191 = vmatprep.subr.mxu0 0.0
        %1192 = vmatpush1.xpose.msra.mxu0 0.0
        %1193 = vmatprep.subr.mxu0 0.0
        %1194 = vmatpush1.xpose.msra.mxu0 0.0
        %1195 = vmatprep.subr.mxu0 0.0
        %1196 = vmatpush1.xpose.msra.mxu0 0.0
        %1197 = vmatprep.subr.mxu0 0.0
        %1198 = vmatpush1.xpose.msra.mxu0 0.0
        %1199 = vmatprep.subr.mxu0 0.0
        %1200 = vmatpush1.xpose.msra.mxu0 0.0
        %1201 = vmatprep.subr.mxu0 0.0
        %1202 = vmatpush1.xpose.msra.mxu0 0.0
        %1203 = vmatprep.subr.mxu0 0.0
        %1204 = vmatpush1.xpose.msra.mxu0 0.0
        %1205 = vmatprep.subr.mxu0 0.0
        %1206 = vmatpush1.xpose.msra.mxu0 0.0
        %1207 = vmatprep.subr.mxu0 0.0
        %1208 = vmatpush1.xpose.msra.mxu0 0.0
        %1209 = vmatprep.subr.mxu0 0.0
        %1210 = vmatpush1.xpose.msra.mxu0 0.0
        %1211 = vmatprep.subr.mxu0 0.0
        %1212 = vmatpush1.xpose.msra.mxu0 0.0
        %1213 = vmatprep.subr.mxu0 0.0
        %1214 = vmatpush1.xpose.msra.mxu0 0.0
        %1215 = vmatprep.subr.mxu0 0.0
        %1216 = vmatpush1.xpose.msra.mxu0 0.0
        %1217 = vmatprep.subr.mxu0 0.0
        %1218 = vmatpush1.xpose.msra.mxu0 0.0
        %1219 = vmatprep.subr.mxu0 0.0
        %1220 = vmatpush1.xpose.msra.mxu0 0.0
        %1221 = vmatprep.subr.mxu0 0.0
        %1222 = vmatpush1.xpose.msra.mxu0 0.0
        %1223 = vmatprep.subr.mxu0 0.0
        %1224 = vmatpush1.xpose.msra.mxu0 0.0
        %1225 = vmatprep.mubr.f32.mxu0 0.0
        %1226 = vmatmul.mubr.f32.gmra.mrb[0].mxu0 %v1157
        %v1227 = vpop.f32.mrb[0].mxu0
        %v1228 = vadd.f32 0.0, %v1227
        %v1229 = vpop.f32.mrb[0].mxu0
        %1230 = vdwg.mxu0
        %v1231 = vsel %vm823, %v1228, -inf
        %1232 = vmax.xlane.f32.xlu0 %v1231
        %v1233 = vpop.xlane.xlu0 %1232
        %v1234 = vsub.f32 %v1228, %v1233
        %v1235 = vmul.f32 %v1234, 1.442695
        %v1236 = vpow.pop %v1235
        %v1237 = vsel %vm823, %v1236, 0.0
        %1238 = vadd.xlane.f32.xlu0 %v1237
        %v1239 = vpop.xlane.xlu0 %1238
        %v1240 = vrcp.pop %v1239
        %v1241 = vmul.f32 %v1236, %v1240
        %s1242 = scalar_lea.vmem %s566, 16 [#allocation15]
        %1243 = vst.msk [vmem:[%s1242] sm:$0xff] %vm823, %v1241
        %1244 = vrot.lane.b32.xlu0 %v820, 112
        %v1245 = vpop.permute.xlu0 %1244
        %v1248 = vsel %vm823, %v1241, 0
        %1250 = vmatprep.subr.mxu0 0.0
        %1251 = vmatpush1.msra.mxu0 %v1245
        %1252 = vmatprep.subr.mxu0 0.0
        %1253 = vmatpush1.msra.mxu0 0.0
        %1254 = vmatprep.subr.mxu0 0.0
        %1255 = vmatpush1.msra.mxu0 0.0
        %1256 = vmatprep.subr.mxu0 0.0
        %1257 = vmatpush1.msra.mxu0 0.0
        %1258 = vmatprep.subr.mxu0 0.0
        %1259 = vmatpush1.msra.mxu0 0.0
        %1260 = vmatprep.subr.mxu0 0.0
        %1261 = vmatpush1.msra.mxu0 0.0
        %1262 = vmatprep.subr.mxu0 0.0
        %1263 = vmatpush1.msra.mxu0 0.0
        %1264 = vmatprep.subr.mxu0 0.0
        %1265 = vmatpush1.msra.mxu0 0.0
        %1266 = vmatprep.subr.mxu0 0.0
        %1267 = vmatpush1.msra.mxu0 0.0
        %1268 = vmatprep.subr.mxu0 0.0
        %1269 = vmatpush1.msra.mxu0 0.0
        %1270 = vmatprep.subr.mxu0 0.0
        %1271 = vmatpush1.msra.mxu0 0.0
        %1272 = vmatprep.subr.mxu0 0.0
        %1273 = vmatpush1.msra.mxu0 0.0
        %1274 = vmatprep.subr.mxu0 0.0
        %1275 = vmatpush1.msra.mxu0 0.0
        %1276 = vmatprep.subr.mxu0 0.0
        %1277 = vmatpush1.msra.mxu0 0.0
        %1278 = vmatprep.subr.mxu0 0.0
        %1279 = vmatpush1.msra.mxu0 0.0
        %1280 = vmatprep.subr.mxu0 0.0
        %1281 = vmatpush1.msra.mxu0 0.0
        %1282 = vmatprep.subr.mxu0 0.0
        %1283 = vmatpush1.msra.mxu0 0.0
        %1284 = vmatprep.subr.mxu0 0.0
        %1285 = vmatpush1.msra.mxu0 0.0
        %1286 = vmatprep.subr.mxu0 0.0
        %1287 = vmatpush1.msra.mxu0 0.0
        %1288 = vmatprep.subr.mxu0 0.0
        %1289 = vmatpush1.msra.mxu0 0.0
        %1290 = vmatprep.subr.mxu0 0.0
        %1291 = vmatpush1.msra.mxu0 0.0
        %1292 = vmatprep.subr.mxu0 0.0
        %1293 = vmatpush1.msra.mxu0 0.0
        %1294 = vmatprep.subr.mxu0 0.0
        %1295 = vmatpush1.msra.mxu0 0.0
        %1296 = vmatprep.subr.mxu0 0.0
        %1297 = vmatpush1.msra.mxu0 0.0
        %1298 = vmatprep.subr.mxu0 0.0
        %1299 = vmatpush1.msra.mxu0 0.0
        %1300 = vmatprep.subr.mxu0 0.0
        %1301 = vmatpush1.msra.mxu0 0.0
        %1302 = vmatprep.subr.mxu0 0.0
        %1303 = vmatpush1.msra.mxu0 0.0
        %1304 = vmatprep.subr.mxu0 0.0
        %1305 = vmatpush1.msra.mxu0 0.0
        %1306 = vmatprep.subr.mxu0 0.0
        %1307 = vmatpush1.msra.mxu0 0.0
        %1308 = vmatprep.subr.mxu0 0.0
        %1309 = vmatpush1.msra.mxu0 0.0
        %1310 = vmatprep.subr.mxu0 0.0
        %1311 = vmatpush1.msra.mxu0 0.0
        %1312 = vmatprep.subr.mxu0 0.0
        %1313 = vmatpush1.msra.mxu0 0.0
        %1314 = vmatprep.mubr.f32.mxu0 0.0
        %1315 = vmatmul.mubr.f32.gmra.mrb[0].mxu0 %v1248
        %v1316 = vpop.f32.mrb[0].mxu0
        %v1317 = vadd.f32 0.0, %v1316
        %v1318 = vpop.f32.mrb[0].mxu0
        %1319 = vdwg.mxu0
        %1320 = vrot.lane.b32.xlu0 %v650, 104
        %v1321 = vpop.permute.xlu0 %1320
        %1322 = vrot.lane.b32.xlu0 %v735, 104
        %v1323 = vpop.permute.xlu0 %1322
        %v1324 = vsel %vm823, %v1321, 0
        %v1326 = vsel %vm823, %v1323, 0
        %1328 = vmatprep.subr.mxu0 0.0
        %1329 = vmatpush1.xpose.msra.mxu0 %v1326
        %1330 = vmatprep.subr.mxu0 0.0
        %1331 = vmatpush1.xpose.msra.mxu0 0.0
        %1332 = vmatprep.subr.mxu0 0.0
        %1333 = vmatpush1.xpose.msra.mxu0 0.0
        %1334 = vmatprep.subr.mxu0 0.0
        %1335 = vmatpush1.xpose.msra.mxu0 0.0
        %1336 = vmatprep.subr.mxu0 0.0
        %1337 = vmatpush1.xpose.msra.mxu0 0.0
        %1338 = vmatprep.subr.mxu0 0.0
        %1339 = vmatpush1.xpose.msra.mxu0 0.0
        %1340 = vmatprep.subr.mxu0 0.0
        %1341 = vmatpush1.xpose.msra.mxu0 0.0
        %1342 = vmatprep.subr.mxu0 0.0
        %1343 = vmatpush1.xpose.msra.mxu0 0.0
        %1344 = vmatprep.subr.mxu0 0.0
        %1345 = vmatpush1.xpose.msra.mxu0 0.0
        %1346 = vmatprep.subr.mxu0 0.0
        %1347 = vmatpush1.xpose.msra.mxu0 0.0
        %1348 = vmatprep.subr.mxu0 0.0
        %1349 = vmatpush1.xpose.msra.mxu0 0.0
        %1350 = vmatprep.subr.mxu0 0.0
        %1351 = vmatpush1.xpose.msra.mxu0 0.0
        %1352 = vmatprep.subr.mxu0 0.0
        %1353 = vmatpush1.xpose.msra.mxu0 0.0
        %1354 = vmatprep.subr.mxu0 0.0
        %1355 = vmatpush1.xpose.msra.mxu0 0.0
        %1356 = vmatprep.subr.mxu0 0.0
        %1357 = vmatpush1.xpose.msra.mxu0 0.0
        %1358 = vmatprep.subr.mxu0 0.0
        %1359 = vmatpush1.xpose.msra.mxu0 0.0
        %1360 = vmatprep.subr.mxu0 0.0
        %1361 = vmatpush1.xpose.msra.mxu0 0.0
        %1362 = vmatprep.subr.mxu0 0.0
        %1363 = vmatpush1.xpose.msra.mxu0 0.0
        %1364 = vmatprep.subr.mxu0 0.0
        %1365 = vmatpush1.xpose.msra.mxu0 0.0
        %1366 = vmatprep.subr.mxu0 0.0
        %1367 = vmatpush1.xpose.msra.mxu0 0.0
        %1368 = vmatprep.subr.mxu0 0.0
        %1369 = vmatpush1.xpose.msra.mxu0 0.0
        %1370 = vmatprep.subr.mxu0 0.0
        %1371 = vmatpush1.xpose.msra.mxu0 0.0
        %1372 = vmatprep.subr.mxu0 0.0
        %1373 = vmatpush1.xpose.msra.mxu0 0.0
        %1374 = vmatprep.subr.mxu0 0.0
        %1375 = vmatpush1.xpose.msra.mxu0 0.0
        %1376 = vmatprep.subr.mxu0 0.0
        %1377 = vmatpush1.xpose.msra.mxu0 0.0
        %1378 = vmatprep.subr.mxu0 0.0
        %1379 = vmatpush1.xpose.msra.mxu0 0.0
        %1380 = vmatprep.subr.mxu0 0.0
        %1381 = vmatpush1.xpose.msra.mxu0 0.0
        %1382 = vmatprep.subr.mxu0 0.0
        %1383 = vmatpush1.xpose.msra.mxu0 0.0
        %1384 = vmatprep.subr.mxu0 0.0
        %1385 = vmatpush1.xpose.msra.mxu0 0.0
        %1386 = vmatprep.subr.mxu0 0.0
        %1387 = vmatpush1.xpose.msra.mxu0 0.0
        %1388 = vmatprep.subr.mxu0 0.0
        %1389 = vmatpush1.xpose.msra.mxu0 0.0
        %1390 = vmatprep.subr.mxu0 0.0
        %1391 = vmatpush1.xpose.msra.mxu0 0.0
        %1392 = vmatprep.mubr.f32.mxu0 0.0
        %1393 = vmatmul.mubr.f32.gmra.mrb[0].mxu0 %v1324
        %v1394 = vpop.f32.mrb[0].mxu0
        %v1395 = vadd.f32 0.0, %v1394
        %v1396 = vpop.f32.mrb[0].mxu0
        %1397 = vdwg.mxu0
        %v1398 = vsel %vm823, %v1395, -inf
        %1399 = vmax.xlane.f32.xlu0 %v1398
        %v1400 = vpop.xlane.xlu0 %1399
        %v1401 = vsub.f32 %v1395, %v1400
        %v1402 = vmul.f32 %v1401, 1.442695
        %v1403 = vpow.pop %v1402
        %v1404 = vsel %vm823, %v1403, 0.0
        %1405 = vadd.xlane.f32.xlu0 %v1404
        %v1406 = vpop.xlane.xlu0 %1405
        %v1407 = vrcp.pop %v1406
        %v1408 = vmul.f32 %v1403, %v1407
        %s1409 = scalar_lea.vmem %s566, 24 [#allocation15]
        %1410 = vst.msk [vmem:[%s1409] sm:$0xff] %vm823, %v1408
        %1411 = vrot.lane.b32.xlu0 %v820, 104
        %v1412 = vpop.permute.xlu0 %1411
        %v1415 = vsel %vm823, %v1408, 0
        %1417 = vmatprep.subr.mxu0 0.0
        %1418 = vmatpush1.msra.mxu0 %v1412
        %1419 = vmatprep.subr.mxu0 0.0
        %1420 = vmatpush1.msra.mxu0 0.0
        %1421 = vmatprep.subr.mxu0 0.0
        %1422 = vmatpush1.msra.mxu0 0.0
        %1423 = vmatprep.subr.mxu0 0.0
        %1424 = vmatpush1.msra.mxu0 0.0
        %1425 = vmatprep.subr.mxu0 0.0
        %1426 = vmatpush1.msra.mxu0 0.0
        %1427 = vmatprep.subr.mxu0 0.0
        %1428 = vmatpush1.msra.mxu0 0.0
        %1429 = vmatprep.subr.mxu0 0.0
        %1430 = vmatpush1.msra.mxu0 0.0
        %1431 = vmatprep.subr.mxu0 0.0
        %1432 = vmatpush1.msra.mxu0 0.0
        %1433 = vmatprep.subr.mxu0 0.0
        %1434 = vmatpush1.msra.mxu0 0.0
        %1435 = vmatprep.subr.mxu0 0.0
        %1436 = vmatpush1.msra.mxu0 0.0
        %1437 = vmatprep.subr.mxu0 0.0
        %1438 = vmatpush1.msra.mxu0 0.0
        %1439 = vmatprep.subr.mxu0 0.0
        %1440 = vmatpush1.msra.mxu0 0.0
        %1441 = vmatprep.subr.mxu0 0.0
        %1442 = vmatpush1.msra.mxu0 0.0
        %1443 = vmatprep.subr.mxu0 0.0
        %1444 = vmatpush1.msra.mxu0 0.0
        %1445 = vmatprep.subr.mxu0 0.0
        %1446 = vmatpush1.msra.mxu0 0.0
        %1447 = vmatprep.subr.mxu0 0.0
        %1448 = vmatpush1.msra.mxu0 0.0
        %1449 = vmatprep.subr.mxu0 0.0
        %1450 = vmatpush1.msra.mxu0 0.0
        %1451 = vmatprep.subr.mxu0 0.0
        %1452 = vmatpush1.msra.mxu0 0.0
        %1453 = vmatprep.subr.mxu0 0.0
        %1454 = vmatpush1.msra.mxu0 0.0
        %1455 = vmatprep.subr.mxu0 0.0
        %1456 = vmatpush1.msra.mxu0 0.0
        %1457 = vmatprep.subr.mxu0 0.0
        %1458 = vmatpush1.msra.mxu0 0.0
        %1459 = vmatprep.subr.mxu0 0.0
        %1460 = vmatpush1.msra.mxu0 0.0
        %1461 = vmatprep.subr.mxu0 0.0
        %1462 = vmatpush1.msra.mxu0 0.0
        %1463 = vmatprep.subr.mxu0 0.0
        %1464 = vmatpush1.msra.mxu0 0.0
        %1465 = vmatprep.subr.mxu0 0.0
        %1466 = vmatpush1.msra.mxu0 0.0
        %1467 = vmatprep.subr.mxu0 0.0
        %1468 = vmatpush1.msra.mxu0 0.0
        %1469 = vmatprep.subr.mxu0 0.0
        %1470 = vmatpush1.msra.mxu0 0.0
        %1471 = vmatprep.subr.mxu0 0.0
        %1472 = vmatpush1.msra.mxu0 0.0
        %1473 = vmatprep.subr.mxu0 0.0
        %1474 = vmatpush1.msra.mxu0 0.0
        %1475 = vmatprep.subr.mxu0 0.0
        %1476 = vmatpush1.msra.mxu0 0.0
        %1477 = vmatprep.subr.mxu0 0.0
        %1478 = vmatpush1.msra.mxu0 0.0
        %1479 = vmatprep.subr.mxu0 0.0
        %1480 = vmatpush1.msra.mxu0 0.0
        %1481 = vmatprep.mubr.f32.mxu0 0.0
        %1482 = vmatmul.mubr.f32.gmra.mrb[0].mxu0 %v1415
        %v1483 = vpop.f32.mrb[0].mxu0
        %v1484 = vadd.f32 0.0, %v1483
        %v1485 = vpop.f32.mrb[0].mxu0
        %1486 = vdwg.mxu0
        %1488 = vrot.lane.b32.xlu0 %v1150, 8
        %v1489 = vpop.permute.xlu0 %1488
        %1492 = vrot.lane.b32.xlu0 %v1317, 16
        %v1493 = vpop.permute.xlu0 %1492
        %1496 = vrot.lane.b32.xlu0 %v1484, 24
        %v1497 = vpop.permute.xlu0 %1496
        %v1499 = vsel %vm823, %v982, %v1489
        %vm1500 = vcmask 130048
        %v1501 = vsel %vm1500, %v1499, %v1493
        %vm1502 = vcmask 195584
        %v1503 = vsel %vm1502, %v1501, %v1497
        %v1504 = vld [vmem:[%s9] sm:$0xff]
        %v1505 = vld [vmem:[%s9 + $0x8] sm:$0xff]
        %v1506 = vld [vmem:[%s9 + $0x10] sm:$0xff]
        %v1507 = vld [vmem:[%s9 + $0x18] sm:$0xff]
        %v1508 = vld [vmem:[%s10] sm:$0x1]
        %v1510 = vlaneseq
        %v1511 = vshrl.u32 %v1510, 7
        %v1512 = vsub.s32 0, %v1511
        %v1513 = vrot.slane %v1508, %v1512
        %v1516 = vsel %vm579, %v1503, 0
        %1518 = vmatprep.subr.mxu0 0.0
        %1519 = vmatpush1.msra.mxu0 %v1504
        %1520 = vmatprep.subr.mxu0 0.0
        %1521 = vmatpush1.msra.mxu0 %v1505
        %1522 = vmatprep.subr.mxu0 0.0
        %1523 = vmatpush1.msra.mxu0 %v1506
        %1524 = vmatprep.subr.mxu0 0.0
        %1525 = vmatpush1.msra.mxu0 %v1507
        %1526 = vmatprep.subr.mxu0 0.0
        %1527 = vmatpush1.msra.mxu0 0.0
        %1528 = vmatprep.subr.mxu0 0.0
        %1529 = vmatpush1.msra.mxu0 0.0
        %1530 = vmatprep.subr.mxu0 0.0
        %1531 = vmatpush1.msra.mxu0 0.0
        %1532 = vmatprep.subr.mxu0 0.0
        %1533 = vmatpush1.msra.mxu0 0.0
        %1534 = vmatprep.subr.mxu0 0.0
        %1535 = vmatpush1.msra.mxu0 0.0
        %1536 = vmatprep.subr.mxu0 0.0
        %1537 = vmatpush1.msra.mxu0 0.0
        %1538 = vmatprep.subr.mxu0 0.0
        %1539 = vmatpush1.msra.mxu0 0.0
        %1540 = vmatprep.subr.mxu0 0.0
        %1541 = vmatpush1.msra.mxu0 0.0
        %1542 = vmatprep.subr.mxu0 0.0
        %1543 = vmatpush1.msra.mxu0 0.0
        %1544 = vmatprep.subr.mxu0 0.0
        %1545 = vmatpush1.msra.mxu0 0.0
        %1546 = vmatprep.subr.mxu0 0.0
        %1547 = vmatpush1.msra.mxu0 0.0
        %1548 = vmatprep.subr.mxu0 0.0
        %1549 = vmatpush1.msra.mxu0 0.0
        %1550 = vmatprep.subr.mxu0 0.0
        %1551 = vmatpush1.msra.mxu0 0.0
        %1552 = vmatprep.subr.mxu0 0.0
        %1553 = vmatpush1.msra.mxu0 0.0
        %1554 = vmatprep.subr.mxu0 0.0
        %1555 = vmatpush1.msra.mxu0 0.0
        %1556 = vmatprep.subr.mxu0 0.0
        %1557 = vmatpush1.msra.mxu0 0.0
        %1558 = vmatprep.subr.mxu0 0.0
        %1559 = vmatpush1.msra.mxu0 0.0
        %1560 = vmatprep.subr.mxu0 0.0
        %1561 = vmatpush1.msra.mxu0 0.0
        %1562 = vmatprep.subr.mxu0 0.0
        %1563 = vmatpush1.msra.mxu0 0.0
        %1564 = vmatprep.subr.mxu0 0.0
        %1565 = vmatpush1.msra.mxu0 0.0
        %1566 = vmatprep.subr.mxu0 0.0
        %1567 = vmatpush1.msra.mxu0 0.0
        %1568 = vmatprep.subr.mxu0 0.0
        %1569 = vmatpush1.msra.mxu0 0.0
        %1570 = vmatprep.subr.mxu0 0.0
        %1571 = vmatpush1.msra.mxu0 0.0
        %1572 = vmatprep.subr.mxu0 0.0
        %1573 = vmatpush1.msra.mxu0 0.0
        %1574 = vmatprep.subr.mxu0 0.0
        %1575 = vmatpush1.msra.mxu0 0.0
        %1576 = vmatprep.subr.mxu0 0.0
        %1577 = vmatpush1.msra.mxu0 0.0
        %1578 = vmatprep.subr.mxu0 0.0
        %1579 = vmatpush1.msra.mxu0 0.0
        %1580 = vmatprep.subr.mxu0 0.0
        %1581 = vmatpush1.msra.mxu0 0.0
        %1582 = vmatprep.mubr.f32.mxu0 0.0
        %1583 = vmatmul.mubr.f32.gmra.mrb[0].mxu0 %v1516
        %v1584 = vpop.f32.mrb[0].mxu0
        %v1585 = vadd.f32 %v1513, %v1584
        %v1586 = vpop.f32.mrb[0].mxu0
        %1587 = vdwg.mxu0
        %1588 = vst.msk [vmem:[%s559] sm:$0xff] %vm579, %v1585
        %s1589 = sand.u32 %s292, 1
        %s1590 = scalar_lea.sflag [#allocation4], %s1589
        %s1591 = sand.u32 %s292, 1
        %s1592 = smul.addr %s1591, 8
        %s1593 = scalar_lea.vmem [#allocation14], %s1592
        %s1594 = sand.u32 %s318, 1
        %s1595 = scalar_lea.sflag [#allocation16], %s1594
        %s1596 = sand.u32 %s318, 1
        %s1597 = smul.addr %s1596, 32
        %s1598 = scalar_lea.vmem [#allocation15], %s1597
        // Predicated region
        $region93: #{tpu_custom_call.1} parent=63 // pred_check
          %p1599 = pneg %p302
        $region94: #{tpu_custom_call.1} parent=63 // pred_check_branch
          %1601 = sbr.rel (%p1599) target = $region96
        $region95: #{tpu_custom_call.1} parent=63 // pred_region
          %s1603 = ssub.s32 128, 128
          %1604 = vsyncadd %s1590, %s1603
          %s1605 = smul.addr %s38, 128
          %s1606 = scalar_lea.hbm %s11, %s1605
          %s1608 = sshll.u32 %s1593, 4
          %s1609 = int_to_ptr.vmem [resolvable:$true] %s1608
          %1611 = dma.vmem_to_hbm [thread:$0]  %s1609, 128, %s1606, %s1590
        $region96: #{tpu_custom_call.1} parent=63 // pred_fallthru
          _
        // Predicated region
        $region97: #{tpu_custom_call.1} parent=63 // pred_check
          %p1612 = pneg %p328
        $region98: #{tpu_custom_call.1} parent=63 // pred_check_branch
          %1614 = sbr.rel (%p1612) target = $region100
        $region99: #{tpu_custom_call.1} parent=63 // pred_region
          %s1616 = ssub.s32 512, 512
          %1617 = vsyncadd %s1595, %s1616
          %s1618 = smul.addr %s38, 4
          %s1619 = smul.addr %s1618, 128
          %s1620 = scalar_lea.hbm %s12, %s1619
          %s1621 = sshll.u32 %s1598, 4
          %s1622 = int_to_ptr.vmem [resolvable:$true] %s1621
          %1627 = dma.vmem_to_hbm [thread:$0]  %s1622, 512, %s1620, %s1595, 128, 128, 8
        $region100: #{tpu_custom_call.1} parent=63 // pred_fallthru
          _
      $region64: #{tpu_custom_call.1} parent=5 // pred_fallthru
        _
      %p1628 = scmp.le.s32.totalorder 2, %s33
      // Predicated region
      $region101: #{tpu_custom_call.1} parent=5 // pred_check
        %p1629 = pneg %p1628
      $region102: #{tpu_custom_call.1} parent=5 // pred_check_branch
        %1631 = sbr.rel (%p1629) target = $region104
      $region103: #{tpu_custom_call.1} parent=5 // pred_region
        %s1632 = ssub.s32 %s33, 2
        // Predicated region
        $region105: #{tpu_custom_call.1} parent=103 // pred_check
          %p1633 = pneg %p308
        $region106: #{tpu_custom_call.1} parent=103 // pred_check_branch
          %1635 = sbr.rel (%p1633) target = $region108
        $region107: #{tpu_custom_call.1} parent=103 // pred_region
          %s1636 = sand.u32 %s293, 1
          %s1637 = scalar_lea.sflag [#allocation4], %s1636
          %s1638 = sand.u32 %s293, 1
          %s1639 = smul.addr %s1638, 8
          %s1640 = scalar_lea.vmem [#allocation14], %s1639
          %1641 = dma.done %s1637, 128
        $region108: #{tpu_custom_call.1} parent=103 // pred_fallthru
          _
        // Predicated region
        $region109: #{tpu_custom_call.1} parent=103 // pred_check
          %p1642 = pneg %p334
        $region110: #{tpu_custom_call.1} parent=103 // pred_check_branch
          %1644 = sbr.rel (%p1642) target = $region112
        $region111: #{tpu_custom_call.1} parent=103 // pred_region
          %s1645 = sand.u32 %s319, 1
          %s1646 = scalar_lea.sflag [#allocation16], %s1645
          %s1647 = sand.u32 %s319, 1
          %s1648 = smul.addr %s1647, 32
          %s1649 = scalar_lea.vmem [#allocation15], %s1648
          %1650 = dma.done %s1646, 512
        $region112: #{tpu_custom_call.1} parent=103 // pred_fallthru
          _
      $region104: #{tpu_custom_call.1} parent=5 // pred_fallthru
        _
    $region6: #{tpu_custom_call.1} parent=1 // loop_footer
      %s37 = sadd.s32 1, %s33
    $region7: #{tpu_custom_call.1} parent=1 // loop_footer_branch
      %32 = sbr.rel target = $region3
    $region8: #{tpu_custom_call.1} parent=1 // loop_exit
      _
    %1651 = vsyncpa [#allocation3], 1
    %s1652 = scalar_lea.sflag [#allocation3], 1
    %1653 = vsyncpa %s1652, 1
    %1654 = vsyncpa [#allocation6], 1
    %s1655 = scalar_lea.sflag [#allocation6], 1
    %1656 = vsyncpa %s1655, 1
    %1657 = vsyncpa [#allocation9], 1
    %1658 = vsyncpa [#allocation12], 1
    %1659 = vsyncpa [#allocation4], 1
    %s1660 = scalar_lea.sflag [#allocation4], 1
    %1661 = vsyncpa %s1660, 1
    %1662 = vsyncpa [#allocation16], 1
    %s1663 = scalar_lea.sflag [#allocation16], 1
    %1664 = vsyncpa %s1663, 1

</llo_original>
